<compile_context>
chip_gen: v6e
topology: v6e:2x2x1
jax: 0.10.0
libtpu: 0.0.40
codegen_flags: <defaults>
</compile_context>

<pallas_src>
import functools

import jax
import jax.numpy as jnp
from jax.experimental import pallas as pl
from jax.experimental.pallas import tpu as pltpu


DOT_DTYPE = jnp.bfloat16   # MXU operand dtype; accumulation is always f32.
ACT_DTYPE = jnp.bfloat16   # at-rest activation dtype (HBM).
ROW_ALIGN = 16             # second-minor tile alignment (covers f32 and bf16).
LANES = 128                # TPU lane count.
GROUP = 32                 # lane stride of each pool-quadrant group (4*32=128).


def _round_up(x, m):
    return (x + m - 1) // m * m


def _pad_rows(x, rows):
    if rows == x.shape[0]:
        return x
    return jnp.pad(x, ((0, rows - x.shape[0]), (0, 0)))


def _pick_tile(m, cap):
    """Row tile: at least 2 grid steps when possible (dual-TC on v7x)."""
    half = _round_up(max(1, -(-m // 2)), ROW_ALIGN)
    return max(ROW_ALIGN, min(cap, half))


# ----------------------------------------------------------------------------
# Kernel 1: block-diag conv matmul + bias + sigmoid + 2x2 avg-pool (fused)
# ----------------------------------------------------------------------------
def _conv_sigmoid_pool_kernel(x_ref, w_ref, b_ref, o_ref):
    # One block-diagonal matmul covers all four pool quadrants: lanes
    # [32q, 32q+O) of s hold quadrant q's conv output for this row tile.
    s = jnp.dot(x_ref[...], w_ref[...], preferred_element_type=jnp.float32)
    s = jax.nn.sigmoid(s + b_ref[...])          # bias added once, f32 epilogue
    # Sum the four 32-lane groups via XLU rotations. The shift set {32,64,96}
    # is symmetric mod 128, so lanes [0, O) get all four quadrants regardless
    # of the hardware rotate direction.
    acc = (s
           + pltpu.roll(s, shift=32, axis=1)
           + pltpu.roll(s, shift=64, axis=1)
           + pltpu.roll(s, shift=96, axis=1))
    o_ref[...] = (acc * 0.25).astype(o_ref.dtype)


def conv_sigmoid_pool(patches, w_bd, b_row, o_width, *, cap=512):
    """patches: (M, 4K) bf16 quadrant-concatenated im2col rows.
    Returns the pooled, sigmoid-activated conv output as (M, o_width) bf16."""
    M, K4 = patches.shape
    tm = _pick_tile(M, cap)
    Mp = _round_up(M, tm)
    patches = _pad_rows(patches, Mp)

    out = pl.pallas_call(
        _conv_sigmoid_pool_kernel,
        out_shape=jax.ShapeDtypeStruct((Mp, LANES), ACT_DTYPE),
        grid=(Mp // tm,),
        in_specs=[pl.BlockSpec((tm, K4), lambda i: (i, 0)),
                  pl.BlockSpec(w_bd.shape, lambda i: (0, 0)),
                  pl.BlockSpec(b_row.shape, lambda i: (0, 0))],
        out_specs=pl.BlockSpec((tm, LANES), lambda i: (i, 0)),
        compiler_params=pltpu.CompilerParams(
            dimension_semantics=("parallel",)),
    )(patches, w_bd, b_row)
    return out[:M, :o_width]


# ----------------------------------------------------------------------------
# Kernel 2: fused fc1 -> sigmoid -> fc2 -> sigmoid -> fc3 (all widths = 128)
# ----------------------------------------------------------------------------
def _fc_stack_kernel(x_ref, w1_ref, b1_ref, w2_ref, b2_ref, w3_ref, b3_ref,
                     o_ref):
    h = jnp.dot(x_ref[...], w1_ref[...],
                preferred_element_type=jnp.float32) + b1_ref[...]
    h = jax.nn.sigmoid(h)
    h = jnp.dot(h.astype(DOT_DTYPE), w2_ref[...],
                preferred_element_type=jnp.float32) + b2_ref[...]
    h = jax.nn.sigmoid(h)
    h = jnp.dot(h.astype(DOT_DTYPE), w3_ref[...],
                preferred_element_type=jnp.float32) + b3_ref[...]
    o_ref[...] = h.astype(o_ref.dtype)


def fc_stack(x, w1, b1, w2, b2, w3, b3, *, cap=256, n_out=10):
    B, K = x.shape
    tb = _pick_tile(B, cap)
    Bp = _round_up(B, tb)
    xp = _pad_rows(x.astype(DOT_DTYPE), Bp)

    def resident(a):
        return pl.BlockSpec(a.shape, lambda i: (0, 0))

    out = pl.pallas_call(
        _fc_stack_kernel,
        out_shape=jax.ShapeDtypeStruct((Bp, LANES), jnp.float32),
        grid=(Bp // tb,),
        in_specs=[pl.BlockSpec((tb, K), lambda i: (i, 0)),
                  resident(w1), resident(b1),
                  resident(w2), resident(b2),
                  resident(w3), resident(b3)],
        out_specs=pl.BlockSpec((tb, LANES), lambda i: (i, 0)),
        compiler_params=pltpu.CompilerParams(
            dimension_semantics=("parallel",)),
    )(xp, w1, b1, w2, b2, w3, b3)
    return out[:B, :n_out]


# ----------------------------------------------------------------------------
# Glue: quadrant-concatenated im2col (host-side, bf16) + layer composition
# ----------------------------------------------------------------------------
def _pooled_patches(x_nhwc, kh, kw):
    """im2col with the four 2x2-pool quadrants concatenated along K.
    Row m=(b,ph,pw); columns [qK,(q+1)K) hold the conv patch (column order
    (ki,kj,c)) whose output lands at pooled position (ph,pw) with in-window
    offset q=(dy,dx)."""
    B, H, W, C = x_nhwc.shape
    OH, OW = H - kh + 1, W - kw + 1
    assert OH % 2 == 0 and OW % 2 == 0, "2x2 avg-pool needs even conv output"
    POH, POW = OH // 2, OW // 2
    cols = []
    for dy in range(2):
        for dx in range(2):
            for ki in range(kh):
                for kj in range(kw):
                    cols.append(x_nhwc[:, dy + ki: dy + ki + 2 * POH: 2,
                                          dx + kj: dx + kj + 2 * POW: 2, :])
    patches = jnp.concatenate(cols, axis=-1)        # (B, POH, POW, 4*kh*kw*C)
    return patches.reshape(B * POH * POW, 4 * kh * kw * C), (B, POH, POW)


def conv_layer(x_nhwc, w_bd, b_row, *, kh, kw, padding, o_width):
    """Conv2d(stride=1) + sigmoid + AvgPool2d(2,2), fused into one kernel."""
    if padding > 0:
        x_nhwc = jnp.pad(x_nhwc, ((0, 0), (padding, padding),
                                  (padding, padding), (0, 0)))
    patches, (B, POH, POW) = _pooled_patches(x_nhwc, kh, kw)
    out = conv_sigmoid_pool(patches, w_bd, b_row, o_width)
    return out.reshape(B, POH, POW, o_width)


# ----------------------------------------------------------------------------
# Parameters
# ----------------------------------------------------------------------------
def init_lenet_params(key):
    """PyTorch-style uniform(-1/sqrt(fan_in), +1/sqrt(fan_in)), PyTorch layout."""
    def uniform(k, shape, fan_in):
        bound = 1.0 / jnp.sqrt(float(fan_in))
        return jax.random.uniform(k, shape, jnp.float32, -bound, bound)

    ks = jax.random.split(key, 10)
    return {
        "conv1_w": uniform(ks[0], (6, 1, 5, 5), 1 * 5 * 5),
        "conv1_b": uniform(ks[1], (6,), 1 * 5 * 5),
        "conv2_w": uniform(ks[2], (16, 6, 5, 5), 6 * 5 * 5),
        "conv2_b": uniform(ks[3], (16,), 6 * 5 * 5),
        "fc1_w":   uniform(ks[4], (120, 400), 400),
        "fc1_b":   uniform(ks[5], (120,), 400),
        "fc2_w":   uniform(ks[6], (84, 120), 120),
        "fc2_b":   uniform(ks[7], (84,), 120),
        "fc3_w":   uniform(ks[8], (10, 84), 84),
        "fc3_b":   uniform(ks[9], (10,), 84),
    }


def prepare_params(params):
    """One-time relayout into kernel form (block-diag conv weights, padded,
    pre-transposed bf16 FC weights, f32 packed bias rows)."""
    def conv_wb(w_ochw, b):
        O, C, KH, KW = w_ochw.shape
        assert O <= GROUP
        K = KH * KW * C
        # (ki, kj, c) row order matches the im2col column ordering.
        w_mat = jnp.transpose(w_ochw, (2, 3, 1, 0)).reshape(K, O)
        w_bd = jnp.zeros((4 * K, LANES), jnp.float32)
        b_row = jnp.zeros((1, LANES), jnp.float32)
        for q in range(4):
            w_bd = w_bd.at[q * K:(q + 1) * K,
                           q * GROUP: q * GROUP + O].set(w_mat)
            b_row = b_row.at[0, q * GROUP: q * GROUP + O].set(b)
        return w_bd.astype(DOT_DTYPE), b_row

    def fc_wb(w_oi, b, in_pad, out_pad):
        out_f, in_f = w_oi.shape
        wt = jnp.pad(jnp.transpose(w_oi, (1, 0)),
                     ((0, in_pad - in_f), (0, out_pad - out_f)))
        br = jnp.pad(b.reshape(1, -1).astype(jnp.float32),
                     ((0, 0), (0, out_pad - out_f)))
        return wt.astype(DOT_DTYPE), br

    c1w, c1b = conv_wb(params["conv1_w"], params["conv1_b"])
    c2w, c2b = conv_wb(params["conv2_w"], params["conv2_b"])

    # fc1: permute input features from PyTorch's NCHW flatten order to the
    # kernel's NHWC flatten order, so no transpose is needed before fc1.
    w1 = jnp.transpose(params["fc1_w"].reshape(120, 16, 5, 5),
                       (0, 2, 3, 1)).reshape(120, 400)
    f1w, f1b = fc_wb(w1, params["fc1_b"], 400, LANES)
    f2w, f2b = fc_wb(params["fc2_w"], params["fc2_b"], LANES, LANES)
    f3w, f3b = fc_wb(params["fc3_w"], params["fc3_b"], LANES, LANES)

    return {"conv1_w": c1w, "conv1_b": c1b,
            "conv2_w": c2w, "conv2_b": c2b,
            "fc1_w": f1w, "fc1_b": f1b,
            "fc2_w": f2w, "fc2_b": f2b,
            "fc3_w": f3w, "fc3_b": f3b}


# ----------------------------------------------------------------------------
# Forward pass
# ----------------------------------------------------------------------------
def lenet_forward(kp, x_nchw):
    # NCHW (PyTorch) -> NHWC, bf16 at rest.
    x = jnp.transpose(x_nchw, (0, 2, 3, 1)).astype(ACT_DTYPE)      # (B,28,28,1)

    # conv1(pad=2) + sigmoid + avgpool2x2  (fused)                 (B,14,14,6)
    x = conv_layer(x, kp["conv1_w"], kp["conv1_b"],
                   kh=5, kw=5, padding=2, o_width=6)
    # conv2(pad=0) + sigmoid + avgpool2x2  (fused)                 (B,5,5,16)
    x = conv_layer(x, kp["conv2_w"], kp["conv2_b"],
                   kh=5, kw=5, padding=0, o_width=16)

    # Natural NHWC flatten; fc1's weight columns were pre-permuted to match.
    B = x.shape[0]
    x = x.reshape(B, 16 * 5 * 5)

    # fc1 -> sigmoid -> fc2 -> sigmoid -> fc3 (single fused kernel)
    return fc_stack(x, kp["fc1_w"], kp["fc1_b"],
                    kp["fc2_w"], kp["fc2_b"],
                    kp["fc3_w"], kp["fc3_b"])                      # (B, 10)


if __name__ == "__main__":
    key = jax.random.PRNGKey(0)
    k_params, k_x = jax.random.split(key)
    params = prepare_params(init_lenet_params(k_params))

    # LeNet's fc1 dimensionality (16*5*5) implies a 28x28 spatial input.
    x = jax.random.normal(k_x, (2, 1, 28, 28), dtype=jnp.float32)

    fwd = jax.jit(lenet_forward)
    out = jax.block_until_ready(fwd(params, x))
    assert out.shape == (2, 10), out.shape
    assert bool(jnp.all(jnp.isfinite(out)))
    print("KERNEL_OK")
</pallas_src>

<mosaic_0001>
module attributes {stable_mosaic.version = 11 : i64} {
  func.func @_conv_sigmoid_pool_kernel(%arg0: i32, %arg1: memref<208x100xbf16, #tpu.memory_space<vmem>>, %arg2: memref<100x128xbf16, #tpu.memory_space<vmem>>, %arg3: memref<1x128xf32, #tpu.memory_space<vmem>>, %arg4: memref<208x128xbf16, #tpu.memory_space<vmem>>) attributes {dimension_semantics = [#tpu.dimension_semantics<parallel>], iteration_bounds = array<i64: 2>, scalar_prefetch = 0 : i64, scratch_operands = 0 : i64, tpu.core_type = #tpu.core_type<tc>, window_params = [{transform_indices = @transform_0, window_bounds = array<i64: 208, 100>}, {pipeline_mode = #tpu.pipeline_mode<synchronous>, transform_indices = @transform_1, window_bounds = array<i64: 100, 128>}, {pipeline_mode = #tpu.pipeline_mode<synchronous>, transform_indices = @transform_2, window_bounds = array<i64: 1, 128>}, {transform_indices = @transform_3, window_bounds = array<i64: 208, 128>}]} {
    %c0 = arith.constant 0 : index
    %c0_0 = arith.constant 0 : index
    %0 = vector.load %arg1[%c0, %c0_0] : memref<208x100xbf16, #tpu.memory_space<vmem>>, vector<208x100xbf16>
    %c0_1 = arith.constant 0 : index
    %c0_2 = arith.constant 0 : index
    %1 = vector.load %arg2[%c0_1, %c0_2] : memref<100x128xbf16, #tpu.memory_space<vmem>>, vector<100x128xbf16>
    %cst = arith.constant dense<0.000000e+00> : vector<208x128xf32>
    %2 = tpu.matmul %0, %1, %cst {dimension_numbers = #tpu.dot_dimension_numbers<[1], [0], [0], [1], [0, 0, 1, 1], [], []>} : vector<208x100xbf16>, vector<100x128xbf16>, vector<208x128xf32> -> vector<208x128xf32>
    %c0_3 = arith.constant 0 : index
    %c0_4 = arith.constant 0 : index
    %3 = vector.load %arg3[%c0_3, %c0_4] : memref<1x128xf32, #tpu.memory_space<vmem>>, vector<1x128xf32>
    %4 = vector.broadcast %3 : vector<1x128xf32> to vector<208x128xf32>
    %5 = arith.addf %2, %4 : vector<208x128xf32>
    %6 = arith.negf %5 : vector<208x128xf32>
    %7 = math.exp %6 : vector<208x128xf32>
    %cst_5 = arith.constant 1.000000e+00 : f32
    %8 = vector.broadcast %cst_5 : f32 to vector<208x128xf32>
    %9 = arith.addf %8, %7 : vector<208x128xf32>
    %10 = arith.divf %8, %9 : vector<208x128xf32>
    %c32_i32 = arith.constant 32 : i32
    %11 = tpu.dynamic_rotate %10 by %c32_i32 dim 1 : vector<208x128xf32>, i32 -> vector<208x128xf32>
    %12 = arith.addf %10, %11 : vector<208x128xf32>
    %c64_i32 = arith.constant 64 : i32
    %13 = tpu.dynamic_rotate %10 by %c64_i32 dim 1 : vector<208x128xf32>, i32 -> vector<208x128xf32>
    %14 = arith.addf %12, %13 : vector<208x128xf32>
    %c96_i32 = arith.constant 96 : i32
    %15 = tpu.dynamic_rotate %10 by %c96_i32 dim 1 : vector<208x128xf32>, i32 -> vector<208x128xf32>
    %16 = arith.addf %14, %15 : vector<208x128xf32>
    %cst_6 = arith.constant 2.500000e-01 : f32
    %17 = vector.broadcast %cst_6 : f32 to vector<208x128xf32>
    %18 = arith.mulf %16, %17 : vector<208x128xf32>
    %19 = arith.truncf %18 : vector<208x128xf32> to vector<208x128xbf16>
    %c0_7 = arith.constant 0 : index
    %c0_8 = arith.constant 0 : index
    %20 = vector.load %arg4[%c0_7, %c0_8] : memref<208x128xbf16, #tpu.memory_space<vmem>>, vector<208x128xbf16>
    tpu.vector_store %arg4[%c0_7, %c0_8], %19 {strides = array<i32>} : memref<208x128xbf16, #tpu.memory_space<vmem>>, vector<208x128xbf16>,
    return
  }
  func.func @transform_0(%arg0: i32) -> (i32, i32) {
    %c0_i32 = arith.constant 0 : i32
    %c0_i32_0 = arith.constant 0 : i32
    return %arg0, %c0_i32 : i32, i32
  }
  func.func @transform_1(%arg0: i32) -> (i32, i32) {
    %c0_i32 = arith.constant 0 : i32
    %c0_i32_0 = arith.constant 0 : i32
    %c0_i32_1 = arith.constant 0 : i32
    return %c0_i32, %c0_i32_0 : i32, i32
  }
  func.func @transform_2(%arg0: i32) -> (i32, i32) {
    %c0_i32 = arith.constant 0 : i32
    %c0_i32_0 = arith.constant 0 : i32
    %c0_i32_1 = arith.constant 0 : i32
    return %c0_i32, %c0_i32_0 : i32, i32
  }
  func.func @transform_3(%arg0: i32) -> (i32, i32) {
    %c0_i32 = arith.constant 0 : i32
    %c0_i32_0 = arith.constant 0 : i32
    return %arg0, %c0_i32 : i32, i32
  }
}

module attributes {stable_mosaic.version = 11 : i64} {
  func.func @_conv_sigmoid_pool_kernel(%arg0: i32, %arg1: memref<32x600xbf16, #tpu.memory_space<vmem>>, %arg2: memref<600x128xbf16, #tpu.memory_space<vmem>>, %arg3: memref<1x128xf32, #tpu.memory_space<vmem>>, %arg4: memref<32x128xbf16, #tpu.memory_space<vmem>>) attributes {dimension_semantics = [#tpu.dimension_semantics<parallel>], iteration_bounds = array<i64: 2>, scalar_prefetch = 0 : i64, scratch_operands = 0 : i64, tpu.core_type = #tpu.core_type<tc>, window_params = [{transform_indices = @transform_0, window_bounds = array<i64: 32, 600>}, {pipeline_mode = #tpu.pipeline_mode<synchronous>, transform_indices = @transform_1, window_bounds = array<i64: 600, 128>}, {pipeline_mode = #tpu.pipeline_mode<synchronous>, transform_indices = @transform_2, window_bounds = array<i64: 1, 128>}, {transform_indices = @transform_3, window_bounds = array<i64: 32, 128>}]} {
    %c0 = arith.constant 0 : index
    %c0_0 = arith.constant 0 : index
    %0 = vector.load %arg1[%c0, %c0_0] : memref<32x600xbf16, #tpu.memory_space<vmem>>, vector<32x600xbf16>
    %c0_1 = arith.constant 0 : index
    %c0_2 = arith.constant 0 : index
    %1 = vector.load %arg2[%c0_1, %c0_2] : memref<600x128xbf16, #tpu.memory_space<vmem>>, vector<600x128xbf16>
    %cst = arith.constant dense<0.000000e+00> : vector<32x128xf32>
    %2 = tpu.matmul %0, %1, %cst {dimension_numbers = #tpu.dot_dimension_numbers<[1], [0], [0], [1], [0, 0, 1, 1], [], []>} : vector<32x600xbf16>, vector<600x128xbf16>, vector<32x128xf32> -> vector<32x128xf32>
    %c0_3 = arith.constant 0 : index
    %c0_4 = arith.constant 0 : index
    %3 = vector.load %arg3[%c0_3, %c0_4] : memref<1x128xf32, #tpu.memory_space<vmem>>, vector<1x128xf32>
    %4 = vector.broadcast %3 : vector<1x128xf32> to vector<32x128xf32>
    %5 = arith.addf %2, %4 : vector<32x128xf32>
    %6 = arith.negf %5 : vector<32x128xf32>
    %7 = math.exp %6 : vector<32x128xf32>
    %cst_5 = arith.constant 1.000000e+00 : f32
    %8 = vector.broadcast %cst_5 : f32 to vector<32x128xf32>
    %9 = arith.addf %8, %7 : vector<32x128xf32>
    %10 = arith.divf %8, %9 : vector<32x128xf32>
    %c32_i32 = arith.constant 32 : i32
    %11 = tpu.dynamic_rotate %10 by %c32_i32 dim 1 : vector<32x128xf32>, i32 -> vector<32x128xf32>
    %12 = arith.addf %10, %11 : vector<32x128xf32>
    %c64_i32 = arith.constant 64 : i32
    %13 = tpu.dynamic_rotate %10 by %c64_i32 dim 1 : vector<32x128xf32>, i32 -> vector<32x128xf32>
    %14 = arith.addf %12, %13 : vector<32x128xf32>
    %c96_i32 = arith.constant 96 : i32
    %15 = tpu.dynamic_rotate %10 by %c96_i32 dim 1 : vector<32x128xf32>, i32 -> vector<32x128xf32>
    %16 = arith.addf %14, %15 : vector<32x128xf32>
    %cst_6 = arith.constant 2.500000e-01 : f32
    %17 = vector.broadcast %cst_6 : f32 to vector<32x128xf32>
    %18 = arith.mulf %16, %17 : vector<32x128xf32>
    %19 = arith.truncf %18 : vector<32x128xf32> to vector<32x128xbf16>
    %c0_7 = arith.constant 0 : index
    %c0_8 = arith.constant 0 : index
    %20 = vector.load %arg4[%c0_7, %c0_8] : memref<32x128xbf16, #tpu.memory_space<vmem>>, vector<32x128xbf16>
    tpu.vector_store %arg4[%c0_7, %c0_8], %19 {strides = array<i32>} : memref<32x128xbf16, #tpu.memory_space<vmem>>, vector<32x128xbf16>,
    return
  }
  func.func @transform_0(%arg0: i32) -> (i32, i32) {
    %c0_i32 = arith.constant 0 : i32
    %c0_i32_0 = arith.constant 0 : i32
    return %arg0, %c0_i32 : i32, i32
  }
  func.func @transform_1(%arg0: i32) -> (i32, i32) {
    %c0_i32 = arith.constant 0 : i32
    %c0_i32_0 = arith.constant 0 : i32
    %c0_i32_1 = arith.constant 0 : i32
    return %c0_i32, %c0_i32_0 : i32, i32
  }
  func.func @transform_2(%arg0: i32) -> (i32, i32) {
    %c0_i32 = arith.constant 0 : i32
    %c0_i32_0 = arith.constant 0 : i32
    %c0_i32_1 = arith.constant 0 : i32
    return %c0_i32, %c0_i32_0 : i32, i32
  }
  func.func @transform_3(%arg0: i32) -> (i32, i32) {
    %c0_i32 = arith.constant 0 : i32
    %c0_i32_0 = arith.constant 0 : i32
    return %arg0, %c0_i32 : i32, i32
  }
}

module attributes {stable_mosaic.version = 11 : i64} {
  func.func @_fc_stack_kernel(%arg0: i32, %arg1: memref<16x400xbf16, #tpu.memory_space<vmem>>, %arg2: memref<400x128xbf16, #tpu.memory_space<vmem>>, %arg3: memref<1x128xf32, #tpu.memory_space<vmem>>, %arg4: memref<128x128xbf16, #tpu.memory_space<vmem>>, %arg5: memref<1x128xf32, #tpu.memory_space<vmem>>, %arg6: memref<128x128xbf16, #tpu.memory_space<vmem>>, %arg7: memref<1x128xf32, #tpu.memory_space<vmem>>, %arg8: memref<16x128xf32, #tpu.memory_space<vmem>>) attributes {dimension_semantics = [#tpu.dimension_semantics<parallel>], iteration_bounds = array<i64: 1>, scalar_prefetch = 0 : i64, scratch_operands = 0 : i64, tpu.core_type = #tpu.core_type<tc>, window_params = [{transform_indices = @transform_0, window_bounds = array<i64: 16, 400>}, {pipeline_mode = #tpu.pipeline_mode<synchronous>, transform_indices = @transform_1, window_bounds = array<i64: 400, 128>}, {pipeline_mode = #tpu.pipeline_mode<synchronous>, transform_indices = @transform_2, window_bounds = array<i64: 1, 128>}, {pipeline_mode = #tpu.pipeline_mode<synchronous>, transform_indices = @transform_3, window_bounds = array<i64: 128, 128>}, {pipeline_mode = #tpu.pipeline_mode<synchronous>, transform_indices = @transform_4, window_bounds = array<i64: 1, 128>}, {pipeline_mode = #tpu.pipeline_mode<synchronous>, transform_indices = @transform_5, window_bounds = array<i64: 128, 128>}, {pipeline_mode = #tpu.pipeline_mode<synchronous>, transform_indices = @transform_6, window_bounds = array<i64: 1, 128>}, {transform_indices = @transform_7, window_bounds = array<i64: 16, 128>}]} {
    %c0 = arith.constant 0 : index
    %c0_0 = arith.constant 0 : index
    %0 = vector.load %arg1[%c0, %c0_0] : memref<16x400xbf16, #tpu.memory_space<vmem>>, vector<16x400xbf16>
    %c0_1 = arith.constant 0 : index
    %c0_2 = arith.constant 0 : index
    %1 = vector.load %arg2[%c0_1, %c0_2] : memref<400x128xbf16, #tpu.memory_space<vmem>>, vector<400x128xbf16>
    %cst = arith.constant dense<0.000000e+00> : vector<16x128xf32>
    %2 = tpu.matmul %0, %1, %cst {dimension_numbers = #tpu.dot_dimension_numbers<[1], [0], [0], [1], [0, 0, 1, 1], [], []>} : vector<16x400xbf16>, vector<400x128xbf16>, vector<16x128xf32> -> vector<16x128xf32>
    %c0_3 = arith.constant 0 : index
    %c0_4 = arith.constant 0 : index
    %3 = vector.load %arg3[%c0_3, %c0_4] : memref<1x128xf32, #tpu.memory_space<vmem>>, vector<1x128xf32>
    %4 = vector.broadcast %3 : vector<1x128xf32> to vector<16x128xf32>
    %5 = arith.addf %2, %4 : vector<16x128xf32>
    %6 = arith.negf %5 : vector<16x128xf32>
    %7 = math.exp %6 : vector<16x128xf32>
    %cst_5 = arith.constant 1.000000e+00 : f32
    %8 = vector.broadcast %cst_5 : f32 to vector<16x128xf32>
    %9 = arith.addf %8, %7 : vector<16x128xf32>
    %10 = arith.divf %8, %9 : vector<16x128xf32>
    %11 = arith.truncf %10 : vector<16x128xf32> to vector<16x128xbf16>
    %c0_6 = arith.constant 0 : index
    %c0_7 = arith.constant 0 : index
    %12 = vector.load %arg4[%c0_6, %c0_7] : memref<128x128xbf16, #tpu.memory_space<vmem>>, vector<128x128xbf16>
    %cst_8 = arith.constant dense<0.000000e+00> : vector<16x128xf32>
    %13 = tpu.matmul %11, %12, %cst_8 {dimension_numbers = #tpu.dot_dimension_numbers<[1], [0], [0], [1], [0, 0, 1, 1], [], []>} : vector<16x128xbf16>, vector<128x128xbf16>, vector<16x128xf32> -> vector<16x128xf32>
    %c0_9 = arith.constant 0 : index
    %c0_10 = arith.constant 0 : index
    %14 = vector.load %arg5[%c0_9, %c0_10] : memref<1x128xf32, #tpu.memory_space<vmem>>, vector<1x128xf32>
    %15 = vector.broadcast %14 : vector<1x128xf32> to vector<16x128xf32>
    %16 = arith.addf %13, %15 : vector<16x128xf32>
    %17 = arith.negf %16 : vector<16x128xf32>
    %18 = math.exp %17 : vector<16x128xf32>
    %cst_11 = arith.constant 1.000000e+00 : f32
    %19 = vector.broadcast %cst_11 : f32 to vector<16x128xf32>
    %20 = arith.addf %19, %18 : vector<16x128xf32>
    %21 = arith.divf %19, %20 : vector<16x128xf32>
    %22 = arith.truncf %21 : vector<16x128xf32> to vector<16x128xbf16>
    %c0_12 = arith.constant 0 : index
    %c0_13 = arith.constant 0 : index
    %23 = vector.load %arg6[%c0_12, %c0_13] : memref<128x128xbf16, #tpu.memory_space<vmem>>, vector<128x128xbf16>
    %cst_14 = arith.constant dense<0.000000e+00> : vector<16x128xf32>
    %24 = tpu.matmul %22, %23, %cst_14 {dimension_numbers = #tpu.dot_dimension_numbers<[1], [0], [0], [1], [0, 0, 1, 1], [], []>} : vector<16x128xbf16>, vector<128x128xbf16>, vector<16x128xf32> -> vector<16x128xf32>
    %c0_15 = arith.constant 0 : index
    %c0_16 = arith.constant 0 : index
    %25 = vector.load %arg7[%c0_15, %c0_16] : memref<1x128xf32, #tpu.memory_space<vmem>>, vector<1x128xf32>
    %26 = vector.broadcast %25 : vector<1x128xf32> to vector<16x128xf32>
    %27 = arith.addf %24, %26 : vector<16x128xf32>
    %c0_17 = arith.constant 0 : index
    %c0_18 = arith.constant 0 : index
    %28 = vector.load %arg8[%c0_17, %c0_18] : memref<16x128xf32, #tpu.memory_space<vmem>>, vector<16x128xf32>
    tpu.vector_store %arg8[%c0_17, %c0_18], %27 {strides = array<i32>} : memref<16x128xf32, #tpu.memory_space<vmem>>, vector<16x128xf32>,
    return
  }
  func.func @transform_0(%arg0: i32) -> (i32, i32) {
    %c0_i32 = arith.constant 0 : i32
    %c0_i32_0 = arith.constant 0 : i32
    return %arg0, %c0_i32 : i32, i32
  }
  func.func @transform_1(%arg0: i32) -> (i32, i32) {
    %c0_i32 = arith.constant 0 : i32
    %c0_i32_0 = arith.constant 0 : i32
    %c0_i32_1 = arith.constant 0 : i32
    return %c0_i32, %c0_i32_0 : i32, i32
  }
  func.func @transform_2(%arg0: i32) -> (i32, i32) {
    %c0_i32 = arith.constant 0 : i32
    %c0_i32_0 = arith.constant 0 : i32
    %c0_i32_1 = arith.constant 0 : i32
    return %c0_i32, %c0_i32_0 : i32, i32
  }
  func.func @transform_3(%arg0: i32) -> (i32, i32) {
    %c0_i32 = arith.constant 0 : i32
    %c0_i32_0 = arith.constant 0 : i32
    %c0_i32_1 = arith.constant 0 : i32
    return %c0_i32, %c0_i32_0 : i32, i32
  }
  func.func @transform_4(%arg0: i32) -> (i32, i32) {
    %c0_i32 = arith.constant 0 : i32
    %c0_i32_0 = arith.constant 0 : i32
    %c0_i32_1 = arith.constant 0 : i32
    return %c0_i32, %c0_i32_0 : i32, i32
  }
  func.func @transform_5(%arg0: i32) -> (i32, i32) {
    %c0_i32 = arith.constant 0 : i32
    %c0_i32_0 = arith.constant 0 : i32
    %c0_i32_1 = arith.constant 0 : i32
    return %c0_i32, %c0_i32_0 : i32, i32
  }
  func.func @transform_6(%arg0: i32) -> (i32, i32) {
    %c0_i32 = arith.constant 0 : i32
    %c0_i32_0 = arith.constant 0 : i32
    %c0_i32_1 = arith.constant 0 : i32
    return %c0_i32, %c0_i32_0 : i32, i32
  }
  func.func @transform_7(%arg0: i32) -> (i32, i32) {
    %c0_i32 = arith.constant 0 : i32
    %c0_i32_0 = arith.constant 0 : i32
    return %arg0, %c0_i32 : i32, i32
  }
}

</mosaic_0001>

<llo_original>
// kernel: lenet_forward.3
$region0: #{lenet_forward.3}
  #allocation0 [shape = 'u32[]', space=smem, size = 0x4, offset = 0x4, fixed_abs, tag = 'smem constant byte address 0x4 - core index']
  #allocation1 [shape = 'u32[144,128]{1,0:T(1,128)}', space=vmem, size = 0x12000, scoped, tag = 'internal scratch']
  %s0 = inlined_call_operand.vmem [shape: bf16[416,100], index: 0, kind: input, shape index: {}]
  %s1 = inlined_call_operand.vmem [shape: bf16[100,128], index: 1, kind: input, shape index: {}]
  %s2 = inlined_call_operand.vmem [shape: f32[1,128], index: 2, kind: input, shape index: {}]
  %s3 = inlined_call_operand.vmem [shape: bf16[416,128], index: 3, kind: output, shape index: {}]
  %s4 = sld [smem:[#allocation0]]
  $region45: #{lenet_forward.3} parent=0
    _
  %s6 = ssub.s32 1, %s4
  %s7 = scalar_select 0, %s6, %s4
  loop: start=0, step=1, limit=4
  $region2: #{lenet_forward.3} parent=0 // loop_pre_header
    _
  $region3: #{lenet_forward.3} parent=0 // loop_header
    %s9 = sphi 0, %s13
    %p10 = scmp.ge.s32.totalorder %s9, 4
    %s19 = sphi 0, %s21
    %s22 = sphi 0, %s19
    %s23 = sphi 0, %s22
    %s39 = sphi 0, %s23
    %s43 = sphi 0, %s43
    %s45 = sphi 0, %s43
    %s46 = sphi 0, %s45
    %s60 = sphi 0, %s46
    %s64 = sphi 0, %s64
    %s66 = sphi 0, %s64
    %s67 = sphi 0, %s66
    %s81 = sphi 0, %s67
    %s87 = sphi 0, %s89
    %s90 = sphi 0, %s87
    %s91 = sphi 0, %s90
    %s107 = sphi 0, %s91
  $region4: #{lenet_forward.3} parent=0 // loop_header_branch
    %12 = sbr.rel (%p10) target = $region8
  $region5: #{lenet_forward.3} parent=0 // loop_body
    %s14 = ssub.s32 %s9, 1
    %s15 = ssub.s32 %s9, 2
    %s16 = sadd.s32 %s9, 1
    %s17 = ssub.s32 %s9, %s16
    %p18 = scmp.eq.s32.totalorder %s17, 0
    %s20 = sadd.s32 %s19, 1
    %s21 = scalar_select %p18, %s19, %s20
    %p24 = pneg %p18
    %p25 = scmp.eq.s32.totalorder %s9, 1
    %p26 = por %p24, %p25
    %p27 = scmp.ne.s32.totalorder %s19, %s22
    %p28 = scmp.eq.s32.totalorder %s9, 0
    %p29 = por %p27, %p28
    %p30 = scmp.ne.s32.totalorder %s19, %s22
    %p31 = scmp.eq.s32.totalorder %s14, 1
    %p32 = por %p30, %p31
    %p33 = scmp.ne.s32.totalorder %s22, %s23
    %p34 = scmp.eq.s32.totalorder %s14, 0
    %p35 = por %p33, %p34
    %p36 = scmp.ne.s32.totalorder %s22, %s23
    %p37 = scmp.eq.s32.totalorder %s15, 1
    %p38 = por %p36, %p37
    %p40 = scmp.ne.s32.totalorder %s23, %s39
    %p41 = scmp.eq.s32.totalorder %s15, 0
    %p42 = por %p40, %p41
    %s44 = sadd.s32 %s43, 1
    %p47 = scmp.eq.s32.totalorder %s9, 1
    %p48 = scmp.ne.s32.totalorder %s43, %s45
    %p49 = scmp.eq.s32.totalorder %s9, 0
    %p50 = por %p48, %p49
    %p51 = scmp.ne.s32.totalorder %s43, %s45
    %p52 = scmp.eq.s32.totalorder %s14, 1
    %p53 = por %p51, %p52
    %p54 = scmp.ne.s32.totalorder %s45, %s46
    %p55 = scmp.eq.s32.totalorder %s14, 0
    %p56 = por %p54, %p55
    %p57 = scmp.ne.s32.totalorder %s45, %s46
    %p58 = scmp.eq.s32.totalorder %s15, 1
    %p59 = por %p57, %p58
    %p61 = scmp.ne.s32.totalorder %s46, %s60
    %p62 = scmp.eq.s32.totalorder %s15, 0
    %p63 = por %p61, %p62
    %s65 = sadd.s32 %s64, 1
    %p68 = scmp.eq.s32.totalorder %s9, 1
    %p69 = scmp.ne.s32.totalorder %s64, %s66
    %p70 = scmp.eq.s32.totalorder %s9, 0
    %p71 = por %p69, %p70
    %p72 = scmp.ne.s32.totalorder %s64, %s66
    %p73 = scmp.eq.s32.totalorder %s14, 1
    %p74 = por %p72, %p73
    %p75 = scmp.ne.s32.totalorder %s66, %s67
    %p76 = scmp.eq.s32.totalorder %s14, 0
    %p77 = por %p75, %p76
    %p78 = scmp.ne.s32.totalorder %s66, %s67
    %p79 = scmp.eq.s32.totalorder %s15, 1
    %p80 = por %p78, %p79
    %p82 = scmp.ne.s32.totalorder %s67, %s81
    %p83 = scmp.eq.s32.totalorder %s15, 0
    %p84 = por %p82, %p83
    %s85 = ssub.s32 %s9, %s16
    %p86 = scmp.eq.s32.totalorder %s85, 0
    %s88 = sadd.s32 %s87, 1
    %s89 = scalar_select %p86, %s87, %s88
    %p92 = pneg %p86
    %p93 = scmp.eq.s32.totalorder %s9, 1
    %p94 = por %p92, %p93
    %p95 = scmp.ne.s32.totalorder %s87, %s90
    %p96 = scmp.eq.s32.totalorder %s9, 0
    %p97 = por %p95, %p96
    %p98 = scmp.ne.s32.totalorder %s87, %s90
    %p99 = scmp.eq.s32.totalorder %s14, 1
    %p100 = por %p98, %p99
    %p101 = scmp.ne.s32.totalorder %s90, %s91
    %p102 = scmp.eq.s32.totalorder %s14, 0
    %p103 = por %p101, %p102
    %p104 = scmp.ne.s32.totalorder %s90, %s91
    %p105 = scmp.eq.s32.totalorder %s15, 1
    %p106 = por %p104, %p105
    %p108 = scmp.ne.s32.totalorder %s91, %s107
    %p109 = scmp.eq.s32.totalorder %s15, 0
    %p110 = por %p108, %p109
    %p111 = scmp.le.s32.totalorder 1, %s9
    %p112 = scmp.lt.s32.totalorder %s9, 3
    %p113 = pnand %p111, %p112
    %p114 = pneg %p113
    // Predicated region
    $region9: #{lenet_forward.3} parent=5 // pred_check
      _
    $region10: #{lenet_forward.3} parent=5 // pred_check_branch
      %116 = sbr.rel (%p113) target = $region12
    $region11: #{lenet_forward.3} parent=5 // pred_region
      %s117 = ssub.s32 %s9, 1
      // Predicated region
      $region13: #{lenet_forward.3} parent=11 // pred_check
        %p118 = pneg %p56
      $region14: #{lenet_forward.3} parent=11 // pred_check_branch
        %120 = sbr.rel (%p118) target = $region16
      $region15: #{lenet_forward.3} parent=11 // pred_region
        _
      $region16: #{lenet_forward.3} parent=11 // pred_fallthru
        _
      // Predicated region
      $region17: #{lenet_forward.3} parent=11 // pred_check
        %p121 = pneg %p77
      $region18: #{lenet_forward.3} parent=11 // pred_check_branch
        %123 = sbr.rel (%p121) target = $region20
      $region19: #{lenet_forward.3} parent=11 // pred_region
        _
      $region20: #{lenet_forward.3} parent=11 // pred_fallthru
        _
    $region12: #{lenet_forward.3} parent=5 // pred_fallthru
      _
    %p124 = scmp.lt.s32.totalorder %s9, 2
    // Predicated region
    $region21: #{lenet_forward.3} parent=5 // pred_check
      %p125 = pneg %p124
    $region22: #{lenet_forward.3} parent=5 // pred_check_branch
      %127 = sbr.rel (%p125) target = $region24
    $region23: #{lenet_forward.3} parent=5 // pred_region
      // Predicated region
      $region25: #{lenet_forward.3} parent=23 // pred_check
        %p128 = pneg %p29
      $region26: #{lenet_forward.3} parent=23 // pred_check_branch
        %130 = sbr.rel (%p128) target = $region28
      $region27: #{lenet_forward.3} parent=23 // pred_region
        %s131 = smul.u32 26, %s9
        %p132 = scmp.lt.s32.totalorder %s131, 51
        %s133 = scalar_select %p132, %s131, 51
        %s134 = smul.addr %s133, 4
        %s135 = scalar_lea.vmem %s0, %s134
        %s136 = smul.u32 26, %s9
      $region28: #{lenet_forward.3} parent=23 // pred_fallthru
        _
    $region24: #{lenet_forward.3} parent=5 // pred_fallthru
      _
    %p137 = scmp.le.s32.totalorder 1, %s9
    %p138 = scmp.lt.s32.totalorder %s9, 3
    %p139 = pnand %p137, %p138
    %p140 = pneg %p139
    // Predicated region
    $region29: #{lenet_forward.3} parent=5 // pred_check
      _
    $region30: #{lenet_forward.3} parent=5 // pred_check_branch
      %142 = sbr.rel (%p139) target = $region32
    $region31: #{lenet_forward.3} parent=5 // pred_region
      %s143 = ssub.s32 %s9, 1
      %s144 = smul.u32 26, %s14
      %p145 = scmp.lt.s32.totalorder %s144, 51
      %s146 = scalar_select %p145, %s144, 51
      %s147 = smul.addr %s146, 4
      %s148 = scalar_lea.vmem %s0, %s147
      %p149 = pneg %p35
      %p150 = pneg %p32
      %p151 = pneg %p56
      %p152 = pneg %p53
      %p153 = pneg %p77
      %p154 = pneg %p74
      %p155 = pneg %p103
      %p156 = pneg %p100
      %s157 = smul.u32 26, %s14
      %p158 = scmp.lt.s32.totalorder %s157, 51
      %s159 = scalar_select %p158, %s157, 51
      %s160 = smul.addr %s159, 4
      %s161 = scalar_lea.vmem %s3, %s160
      %s162 = smul.u32 26, %s14
      %p163 = scmp.lt.s32.totalorder %s162, 51
      %s164 = scalar_select %p163, %s162, 51
      %s165 = smul.addr %s164, 4
      %s166 = scalar_lea.vmem %s0, %s165
      %s167 = smul.u32 26, %s14
      %s168 = smul.u32 26, %s14
      %p169 = scmp.lt.s32.totalorder %s168, 51
      %s170 = scalar_select %p169, %s168, 51
      %s171 = smul.addr %s170, 4
      %s172 = scalar_lea.vmem %s3, %s171
      %s173 = smul.u32 26, %s14
      %v175 = vld [vmem:[%s166] sm:$0xf]
      %v176 = vld [vmem:[%s166 + $0x4] sm:$0xf]
      %v177 = vld [vmem:[%s166 + $0x8] sm:$0xf]
      %v178 = vld [vmem:[%s166 + $0xc] sm:$0xf]
      %v179 = vld [vmem:[%s166 + $0x10] sm:$0xf]
      %v180 = vld [vmem:[%s166 + $0x14] sm:$0xf]
      %v181 = vld [vmem:[%s166 + $0x18] sm:$0xf]
      %v182 = vld [vmem:[%s166 + $0x1c] sm:$0xf]
      %v183 = vld [vmem:[%s166 + $0x20] sm:$0xf]
      %v184 = vld [vmem:[%s166 + $0x24] sm:$0xf]
      %v185 = vld [vmem:[%s166 + $0x28] sm:$0xf]
      %v186 = vld [vmem:[%s166 + $0x2c] sm:$0xf]
      %v187 = vld [vmem:[%s166 + $0x30] sm:$0xf]
      %v188 = vld [vmem:[%s166 + $0x34] sm:$0xf]
      %v189 = vld [vmem:[%s166 + $0x38] sm:$0xf]
      %v190 = vld [vmem:[%s166 + $0x3c] sm:$0xf]
      %v191 = vld [vmem:[%s166 + $0x40] sm:$0xf]
      %v192 = vld [vmem:[%s166 + $0x44] sm:$0xf]
      %v193 = vld [vmem:[%s166 + $0x48] sm:$0xf]
      %v194 = vld [vmem:[%s166 + $0x4c] sm:$0xf]
      %v195 = vld [vmem:[%s166 + $0x50] sm:$0xf]
      %v196 = vld [vmem:[%s166 + $0x54] sm:$0xf]
      %v197 = vld [vmem:[%s166 + $0x58] sm:$0xf]
      %v198 = vld [vmem:[%s166 + $0x5c] sm:$0xf]
      %v199 = vld [vmem:[%s166 + $0x60] sm:$0xf]
      %v200 = vld [vmem:[%s166 + $0x64] sm:$0xf]
      %v201 = vld [vmem:[%s1] sm:$0xf]
      %v202 = vld [vmem:[%s1 + $0x4] sm:$0xf]
      %v203 = vld [vmem:[%s1 + $0x8] sm:$0xf]
      %v204 = vld [vmem:[%s1 + $0xc] sm:$0xf]
      %v205 = vld [vmem:[%s1 + $0x10] sm:$0xf]
      %v206 = vld [vmem:[%s1 + $0x14] sm:$0xf]
      %v207 = vld [vmem:[%s1 + $0x18] sm:$0xf]
      %v208 = vld [vmem:[%s1 + $0x1c] sm:$0xf]
      %v209 = vld [vmem:[%s1 + $0x20] sm:$0xf]
      %v210 = vld [vmem:[%s1 + $0x24] sm:$0xf]
      %v211 = vld [vmem:[%s1 + $0x28] sm:$0xf]
      %v212 = vld [vmem:[%s1 + $0x2c] sm:$0xf]
      %v213 = vld [vmem:[%s1 + $0x30] sm:$0x3]
      %v214 = vld [vmem:[%s2] sm:$0x1]
      %v216 = vlaneseq
      %v217 = vshrl.u32 %v216, 7
      %v218 = vsub.s32 0, %v217
      %v219 = vrot.slane %v214, %v218
      %v247 = vunpack.c.l.b16 %v175
      %v248 = vunpack.c.l.b16 %v176
      %v249 = vunpack.c.l.b16 %v177
      %v250 = vunpack.c.l.b16 %v178
      %v251 = vunpack.c.l.b16 %v179
      %v252 = vunpack.c.l.b16 %v180
      %v253 = vunpack.c.l.b16 %v181
      %v254 = vunpack.c.l.b16 %v182
      %v255 = vunpack.c.l.b16 %v183
      %v256 = vunpack.c.l.b16 %v184
      %v257 = vunpack.c.l.b16 %v185
      %v258 = vunpack.c.l.b16 %v186
      %v259 = vunpack.c.l.b16 %v187
      %v260 = vunpack.c.l.b16 %v188
      %v261 = vunpack.c.l.b16 %v189
      %v262 = vunpack.c.l.b16 %v190
      %v263 = vunpack.c.l.b16 %v191
      %v264 = vunpack.c.l.b16 %v192
      %v265 = vunpack.c.l.b16 %v193
      %v266 = vunpack.c.l.b16 %v194
      %v267 = vunpack.c.l.b16 %v195
      %v268 = vunpack.c.l.b16 %v196
      %v269 = vunpack.c.l.b16 %v197
      %v270 = vunpack.c.l.b16 %v198
      %v271 = vunpack.c.l.b16 %v199
      %v272 = vunpack.c.l.b16 %v200
      %v273 = vpack.c.b16 %v248, %v247
      %v274 = vpack.c.b16 %v250, %v249
      %v275 = vpack.c.b16 %v252, %v251
      %v276 = vpack.c.b16 %v254, %v253
      %v277 = vpack.c.b16 %v256, %v255
      %v278 = vpack.c.b16 %v258, %v257
      %v279 = vpack.c.b16 %v260, %v259
      %v280 = vpack.c.b16 %v262, %v261
      %v281 = vpack.c.b16 %v264, %v263
      %v282 = vpack.c.b16 %v266, %v265
      %v283 = vpack.c.b16 %v268, %v267
      %v284 = vpack.c.b16 %v270, %v269
      %v285 = vpack.c.b16 %v272, %v271
      %v299 = vunpack.c.l.b16 %v201
      %v300 = vunpack.c.l.b16 %v202
      %v301 = vunpack.c.l.b16 %v203
      %v302 = vunpack.c.l.b16 %v204
      %v303 = vunpack.c.l.b16 %v205
      %v304 = vunpack.c.l.b16 %v206
      %v305 = vunpack.c.l.b16 %v207
      %v306 = vunpack.c.l.b16 %v208
      %v307 = vunpack.c.l.b16 %v209
      %v308 = vunpack.c.l.b16 %v210
      %v309 = vunpack.c.l.b16 %v211
      %v310 = vunpack.c.l.b16 %v212
      %v311 = vunpack.c.l.b16 %v213
      %v312 = vpack.c.b16 %v300, %v299
      %v313 = vpack.c.b16 %v302, %v301
      %v314 = vpack.c.b16 %v304, %v303
      %v315 = vpack.c.b16 %v306, %v305
      %v316 = vpack.c.b16 %v308, %v307
      %v317 = vpack.c.b16 %v310, %v309
      %v318 = vpack.c.b16 %v311, %v311
      %vm325 = vcmask 818176
      %v327 = vsel %vm325, %v273, 0
      %v330 = vsel %vm325, %v274, 0
      %v333 = vsel %vm325, %v275, 0
      %v336 = vsel %vm325, %v276, 0
      %v339 = vsel %vm325, %v277, 0
      %v342 = vsel %vm325, %v278, 0
      %v345 = vsel %vm325, %v279, 0
      %v348 = vsel %vm325, %v280, 0
      %v351 = vsel %vm325, %v281, 0
      %v354 = vsel %vm325, %v282, 0
      %v357 = vsel %vm325, %v283, 0
      %v360 = vsel %vm325, %v284, 0
      %v363 = vsel %vm325, %v285, 0
      %vm365 = vcmask 1041408
      %v367 = vsel %vm365, %v318, 0
      %369 = vmatprep.subr.bf16.mxu0 0
      %370 = vmatpush1.bf16.msra.mxu0 0
      %371 = vmatprep.subr.bf16.mxu0 0
      %372 = vmatpush1.bf16.msra.mxu0 %v367
      %373 = vmatprep.subr.bf16.mxu0 0
      %374 = vmatpush1.bf16.msra.mxu0 %v317
      %375 = vmatprep.subr.bf16.mxu0 0
      %376 = vmatpush1.bf16.msra.mxu0 %v316
      %377 = vmatprep.subr.bf16.mxu0 0
      %378 = vmatpush1.bf16.msra.mxu0 %v315
      %379 = vmatprep.subr.bf16.mxu0 0
      %380 = vmatpush1.bf16.msra.mxu0 %v314
      %381 = vmatprep.subr.bf16.mxu0 0
      %382 = vmatpush1.bf16.msra.mxu0 %v313
      %383 = vmatprep.subr.bf16.mxu0 0
      %384 = vmatpush1.bf16.msra.mxu0 %v312
      %385 = vmatprep.subr.bf16.mxu0 0
      %386 = vmatpush2.bf16.msra.mxu0 0
      %387 = vmatprep.subr.bf16.mxu0 0
      %388 = vmatpush2.bf16.msra.mxu0 0
      %389 = vmatprep.subr.bf16.mxu0 0
      %390 = vmatpush2.bf16.msra.mxu0 0
      %391 = vmatprep.subr.bf16.mxu0 0
      %392 = vmatpush2.bf16.msra.mxu0 0
      %393 = vmatprep.subr.bf16.mxu0 0
      %394 = vmatpush2.bf16.msra.mxu0 0
      %395 = vmatprep.subr.bf16.mxu0 0
      %396 = vmatpush2.bf16.msra.mxu0 0
      %397 = vmatprep.subr.bf16.mxu0 0
      %398 = vmatpush2.bf16.msra.mxu0 0
      %399 = vmatprep.subr.bf16.mxu0 0
      %400 = vmatpush2.bf16.msra.mxu0 0
      %401 = vmatprep.mubr.bf16.mxu0 0
      %402 = vmatmul.mubr.bf16.gmra.mxu0 %v327
      %v403 = vpop.f32.mrf.mxu0
      %v404 = vadd.f32 %v219, %v403
      %v405 = vpop.f32.mrf.mxu0
      %v406 = vpop.f32.mrf.mxu0
      %v407 = vadd.f32 %v219, %v406
      %v408 = vpop.f32.mrf.mxu0
      %409 = vmatprep.mubr.bf16.mxu0 0
      %410 = vmatmul.mubr.bf16.gmra.mxu0 %v330
      %v411 = vpop.f32.mrf.mxu0
      %v412 = vadd.f32 %v219, %v411
      %v413 = vpop.f32.mrf.mxu0
      %v414 = vpop.f32.mrf.mxu0
      %v415 = vadd.f32 %v219, %v414
      %v416 = vpop.f32.mrf.mxu0
      %417 = vmatprep.mubr.bf16.mxu0 0
      %418 = vmatmul.mubr.bf16.gmra.mxu0 %v333
      %v419 = vpop.f32.mrf.mxu0
      %v420 = vadd.f32 %v219, %v419
      %v421 = vpop.f32.mrf.mxu0
      %v422 = vpop.f32.mrf.mxu0
      %v423 = vadd.f32 %v219, %v422
      %v424 = vpop.f32.mrf.mxu0
      %425 = vmatprep.mubr.bf16.mxu0 0
      %426 = vmatmul.mubr.bf16.gmra.mxu0 %v336
      %v427 = vpop.f32.mrf.mxu0
      %v428 = vadd.f32 %v219, %v427
      %v429 = vpop.f32.mrf.mxu0
      %v430 = vpop.f32.mrf.mxu0
      %v431 = vadd.f32 %v219, %v430
      %v432 = vpop.f32.mrf.mxu0
      %433 = vmatprep.mubr.bf16.mxu0 0
      %434 = vmatmul.mubr.bf16.gmra.mxu0 %v339
      %v435 = vpop.f32.mrf.mxu0
      %v436 = vadd.f32 %v219, %v435
      %v437 = vpop.f32.mrf.mxu0
      %v438 = vpop.f32.mrf.mxu0
      %v439 = vadd.f32 %v219, %v438
      %v440 = vpop.f32.mrf.mxu0
      %441 = vmatprep.mubr.bf16.mxu0 0
      %442 = vmatmul.mubr.bf16.gmra.mxu0 %v342
      %v443 = vpop.f32.mrf.mxu0
      %v444 = vadd.f32 %v219, %v443
      %v445 = vpop.f32.mrf.mxu0
      %v446 = vpop.f32.mrf.mxu0
      %v447 = vadd.f32 %v219, %v446
      %v448 = vpop.f32.mrf.mxu0
      %449 = vmatprep.mubr.bf16.mxu0 0
      %450 = vmatmul.mubr.bf16.gmra.mxu0 %v345
      %v451 = vpop.f32.mrf.mxu0
      %v452 = vadd.f32 %v219, %v451
      %v453 = vpop.f32.mrf.mxu0
      %v454 = vpop.f32.mrf.mxu0
      %v455 = vadd.f32 %v219, %v454
      %v456 = vpop.f32.mrf.mxu0
      %457 = vmatprep.mubr.bf16.mxu0 0
      %458 = vmatmul.mubr.bf16.gmra.mxu0 %v348
      %v459 = vpop.f32.mrf.mxu0
      %v460 = vadd.f32 %v219, %v459
      %v461 = vpop.f32.mrf.mxu0
      %v462 = vpop.f32.mrf.mxu0
      %v463 = vadd.f32 %v219, %v462
      %v464 = vpop.f32.mrf.mxu0
      %465 = vmatprep.mubr.bf16.mxu0 0
      %466 = vmatmul.mubr.bf16.gmra.mxu0 %v351
      %v467 = vpop.f32.mrf.mxu0
      %v468 = vadd.f32 %v219, %v467
      %v469 = vpop.f32.mrf.mxu0
      %v470 = vpop.f32.mrf.mxu0
      %v471 = vadd.f32 %v219, %v470
      %v472 = vpop.f32.mrf.mxu0
      %473 = vmatprep.mubr.bf16.mxu0 0
      %474 = vmatmul.mubr.bf16.gmra.mxu0 %v354
      %v475 = vpop.f32.mrf.mxu0
      %v476 = vadd.f32 %v219, %v475
      %v477 = vpop.f32.mrf.mxu0
      %v478 = vpop.f32.mrf.mxu0
      %v479 = vadd.f32 %v219, %v478
      %v480 = vpop.f32.mrf.mxu0
      %481 = vmatprep.mubr.bf16.mxu0 0
      %482 = vmatmul.mubr.bf16.gmra.mxu0 %v357
      %v483 = vpop.f32.mrf.mxu0
      %v484 = vadd.f32 %v219, %v483
      %v485 = vpop.f32.mrf.mxu0
      %v486 = vpop.f32.mrf.mxu0
      %v487 = vadd.f32 %v219, %v486
      %v488 = vpop.f32.mrf.mxu0
      %489 = vmatprep.mubr.bf16.mxu0 0
      %490 = vmatmul.mubr.bf16.gmra.mxu0 %v360
      %v491 = vpop.f32.mrf.mxu0
      %v492 = vadd.f32 %v219, %v491
      %v493 = vpop.f32.mrf.mxu0
      %v494 = vpop.f32.mrf.mxu0
      %v495 = vadd.f32 %v219, %v494
      %v496 = vpop.f32.mrf.mxu0
      %497 = vmatprep.mubr.bf16.mxu0 0
      %498 = vmatmul.mubr.bf16.gmra.mxu0 %v363
      %v499 = vpop.f32.mrf.mxu0
      %v500 = vadd.f32 %v219, %v499
      %v501 = vpop.f32.mrf.mxu0
      %v502 = vpop.f32.mrf.mxu0
      %v503 = vadd.f32 %v219, %v502
      %v504 = vpop.f32.mrf.mxu0
      %505 = vdwg.mxu0
      %v506 = vxor.u32 %v404, 2147483648
      %v507 = vxor.u32 %v407, 2147483648
      %v508 = vxor.u32 %v412, 2147483648
      %v509 = vxor.u32 %v415, 2147483648
      %v510 = vxor.u32 %v420, 2147483648
      %v511 = vxor.u32 %v423, 2147483648
      %v512 = vxor.u32 %v428, 2147483648
      %v513 = vxor.u32 %v431, 2147483648
      %v514 = vxor.u32 %v436, 2147483648
      %v515 = vxor.u32 %v439, 2147483648
      %v516 = vxor.u32 %v444, 2147483648
      %v517 = vxor.u32 %v447, 2147483648
      %v518 = vxor.u32 %v452, 2147483648
      %v519 = vxor.u32 %v455, 2147483648
      %v520 = vxor.u32 %v460, 2147483648
      %v521 = vxor.u32 %v463, 2147483648
      %v522 = vxor.u32 %v468, 2147483648
      %v523 = vxor.u32 %v471, 2147483648
      %v524 = vxor.u32 %v476, 2147483648
      %v525 = vxor.u32 %v479, 2147483648
      %v526 = vxor.u32 %v484, 2147483648
      %v527 = vxor.u32 %v487, 2147483648
      %v528 = vxor.u32 %v492, 2147483648
      %v529 = vxor.u32 %v495, 2147483648
      %v530 = vxor.u32 %v500, 2147483648
      %v531 = vxor.u32 %v503, 2147483648
      %v532 = vmul.f32 %v506, 1.442695
      %v533 = vpow.pop %v532
      %v534 = vmul.f32 %v507, 1.442695
      %v535 = vpow.pop %v534
      %v536 = vmul.f32 %v508, 1.442695
      %v537 = vpow.pop %v536
      %v538 = vmul.f32 %v509, 1.442695
      %v539 = vpow.pop %v538
      %v540 = vmul.f32 %v510, 1.442695
      %v541 = vpow.pop %v540
      %v542 = vmul.f32 %v511, 1.442695
      %v543 = vpow.pop %v542
      %v544 = vmul.f32 %v512, 1.442695
      %v545 = vpow.pop %v544
      %v546 = vmul.f32 %v513, 1.442695
      %v547 = vpow.pop %v546
      %v548 = vmul.f32 %v514, 1.442695
      %v549 = vpow.pop %v548
      %v550 = vmul.f32 %v515, 1.442695
      %v551 = vpow.pop %v550
      %v552 = vmul.f32 %v516, 1.442695
      %v553 = vpow.pop %v552
      %v554 = vmul.f32 %v517, 1.442695
      %v555 = vpow.pop %v554
      %v556 = vmul.f32 %v518, 1.442695
      %v557 = vpow.pop %v556
      %v558 = vmul.f32 %v519, 1.442695
      %v559 = vpow.pop %v558
      %v560 = vmul.f32 %v520, 1.442695
      %v561 = vpow.pop %v560
      %v562 = vmul.f32 %v521, 1.442695
      %v563 = vpow.pop %v562
      %v564 = vmul.f32 %v522, 1.442695
      %v565 = vpow.pop %v564
      %v566 = vmul.f32 %v523, 1.442695
      %v567 = vpow.pop %v566
      %v568 = vmul.f32 %v524, 1.442695
      %v569 = vpow.pop %v568
      %v570 = vmul.f32 %v525, 1.442695
      %v571 = vpow.pop %v570
      %v572 = vmul.f32 %v526, 1.442695
      %v573 = vpow.pop %v572
      %v574 = vmul.f32 %v527, 1.442695
      %v575 = vpow.pop %v574
      %v576 = vmul.f32 %v528, 1.442695
      %v577 = vpow.pop %v576
      %v578 = vmul.f32 %v529, 1.442695
      %v579 = vpow.pop %v578
      %v580 = vmul.f32 %v530, 1.442695
      %v581 = vpow.pop %v580
      %v582 = vmul.f32 %v531, 1.442695
      %v583 = vpow.pop %v582
      %v584 = vadd.f32 %v533, 1.0
      %v585 = vadd.f32 %v535, 1.0
      %v586 = vadd.f32 %v537, 1.0
      %v587 = vadd.f32 %v539, 1.0
      %v588 = vadd.f32 %v541, 1.0
      %v589 = vadd.f32 %v543, 1.0
      %v590 = vadd.f32 %v545, 1.0
      %v591 = vadd.f32 %v547, 1.0
      %v592 = vadd.f32 %v549, 1.0
      %v593 = vadd.f32 %v551, 1.0
      %v594 = vadd.f32 %v553, 1.0
      %v595 = vadd.f32 %v555, 1.0
      %v596 = vadd.f32 %v557, 1.0
      %v597 = vadd.f32 %v559, 1.0
      %v598 = vadd.f32 %v561, 1.0
      %v599 = vadd.f32 %v563, 1.0
      %v600 = vadd.f32 %v565, 1.0
      %v601 = vadd.f32 %v567, 1.0
      %v602 = vadd.f32 %v569, 1.0
      %v603 = vadd.f32 %v571, 1.0
      %v604 = vadd.f32 %v573, 1.0
      %v605 = vadd.f32 %v575, 1.0
      %v606 = vadd.f32 %v577, 1.0
      %v607 = vadd.f32 %v579, 1.0
      %v608 = vadd.f32 %v581, 1.0
      %v609 = vadd.f32 %v583, 1.0
      %v610 = vrcp.pop %v584
      %v611 = vmul.f32 1.0, %v610
      %v612 = vrcp.pop %v585
      %v613 = vmul.f32 1.0, %v612
      %v614 = vrcp.pop %v586
      %v615 = vmul.f32 1.0, %v614
      %v616 = vrcp.pop %v587
      %v617 = vmul.f32 1.0, %v616
      %v618 = vrcp.pop %v588
      %v619 = vmul.f32 1.0, %v618
      %v620 = vrcp.pop %v589
      %v621 = vmul.f32 1.0, %v620
      %v622 = vrcp.pop %v590
      %v623 = vmul.f32 1.0, %v622
      %v624 = vrcp.pop %v591
      %v625 = vmul.f32 1.0, %v624
      %v626 = vrcp.pop %v592
      %v627 = vmul.f32 1.0, %v626
      %v628 = vrcp.pop %v593
      %v629 = vmul.f32 1.0, %v628
      %v630 = vrcp.pop %v594
      %v631 = vmul.f32 1.0, %v630
      %v632 = vrcp.pop %v595
      %v633 = vmul.f32 1.0, %v632
      %v634 = vrcp.pop %v596
      %v635 = vmul.f32 1.0, %v634
      %v636 = vrcp.pop %v597
      %v637 = vmul.f32 1.0, %v636
      %v638 = vrcp.pop %v598
      %v639 = vmul.f32 1.0, %v638
      %v640 = vrcp.pop %v599
      %v641 = vmul.f32 1.0, %v640
      %v642 = vrcp.pop %v600
      %v643 = vmul.f32 1.0, %v642
      %v644 = vrcp.pop %v601
      %v645 = vmul.f32 1.0, %v644
      %v646 = vrcp.pop %v602
      %v647 = vmul.f32 1.0, %v646
      %v648 = vrcp.pop %v603
      %v649 = vmul.f32 1.0, %v648
      %v650 = vrcp.pop %v604
      %v651 = vmul.f32 1.0, %v650
      %v652 = vrcp.pop %v605
      %v653 = vmul.f32 1.0, %v652
      %v654 = vrcp.pop %v606
      %v655 = vmul.f32 1.0, %v654
      %v656 = vrcp.pop %v607
      %v657 = vmul.f32 1.0, %v656
      %v658 = vrcp.pop %v608
      %v659 = vmul.f32 1.0, %v658
      %v660 = vrcp.pop %v609
      %v661 = vmul.f32 1.0, %v660
      %662 = vrot.lane.b32.xlu0 %v611, 32
      %v663 = vpop.permute.xlu0 %662
      %664 = vrot.lane.b32.xlu0 %v613, 32
      %v665 = vpop.permute.xlu0 %664
      %666 = vrot.lane.b32.xlu0 %v615, 32
      %v667 = vpop.permute.xlu0 %666
      %668 = vrot.lane.b32.xlu0 %v617, 32
      %v669 = vpop.permute.xlu0 %668
      %670 = vrot.lane.b32.xlu0 %v619, 32
      %v671 = vpop.permute.xlu0 %670
      %672 = vrot.lane.b32.xlu0 %v621, 32
      %v673 = vpop.permute.xlu0 %672
      %674 = vrot.lane.b32.xlu0 %v623, 32
      %v675 = vpop.permute.xlu0 %674
      %676 = vrot.lane.b32.xlu0 %v625, 32
      %v677 = vpop.permute.xlu0 %676
      %678 = vrot.lane.b32.xlu0 %v627, 32
      %v679 = vpop.permute.xlu0 %678
      %680 = vrot.lane.b32.xlu0 %v629, 32
      %v681 = vpop.permute.xlu0 %680
      %682 = vrot.lane.b32.xlu0 %v631, 32
      %v683 = vpop.permute.xlu0 %682
      %684 = vrot.lane.b32.xlu0 %v633, 32
      %v685 = vpop.permute.xlu0 %684
      %686 = vrot.lane.b32.xlu0 %v635, 32
      %v687 = vpop.permute.xlu0 %686
      %688 = vrot.lane.b32.xlu0 %v637, 32
      %v689 = vpop.permute.xlu0 %688
      %690 = vrot.lane.b32.xlu0 %v639, 32
      %v691 = vpop.permute.xlu0 %690
      %692 = vrot.lane.b32.xlu0 %v641, 32
      %v693 = vpop.permute.xlu0 %692
      %694 = vrot.lane.b32.xlu0 %v643, 32
      %v695 = vpop.permute.xlu0 %694
      %696 = vrot.lane.b32.xlu0 %v645, 32
      %v697 = vpop.permute.xlu0 %696
      %698 = vrot.lane.b32.xlu0 %v647, 32
      %v699 = vpop.permute.xlu0 %698
      %700 = vrot.lane.b32.xlu0 %v649, 32
      %v701 = vpop.permute.xlu0 %700
      %702 = vrot.lane.b32.xlu0 %v651, 32
      %v703 = vpop.permute.xlu0 %702
      %704 = vrot.lane.b32.xlu0 %v653, 32
      %v705 = vpop.permute.xlu0 %704
      %706 = vrot.lane.b32.xlu0 %v655, 32
      %v707 = vpop.permute.xlu0 %706
      %708 = vrot.lane.b32.xlu0 %v657, 32
      %v709 = vpop.permute.xlu0 %708
      %710 = vrot.lane.b32.xlu0 %v659, 32
      %v711 = vpop.permute.xlu0 %710
      %712 = vrot.lane.b32.xlu0 %v661, 32
      %v713 = vpop.permute.xlu0 %712
      %v714 = vadd.f32 %v611, %v663
      %v715 = vadd.f32 %v613, %v665
      %v716 = vadd.f32 %v615, %v667
      %v717 = vadd.f32 %v617, %v669
      %v718 = vadd.f32 %v619, %v671
      %v719 = vadd.f32 %v621, %v673
      %v720 = vadd.f32 %v623, %v675
      %v721 = vadd.f32 %v625, %v677
      %v722 = vadd.f32 %v627, %v679
      %v723 = vadd.f32 %v629, %v681
      %v724 = vadd.f32 %v631, %v683
      %v725 = vadd.f32 %v633, %v685
      %v726 = vadd.f32 %v635, %v687
      %v727 = vadd.f32 %v637, %v689
      %v728 = vadd.f32 %v639, %v691
      %v729 = vadd.f32 %v641, %v693
      %v730 = vadd.f32 %v643, %v695
      %v731 = vadd.f32 %v645, %v697
      %v732 = vadd.f32 %v647, %v699
      %v733 = vadd.f32 %v649, %v701
      %v734 = vadd.f32 %v651, %v703
      %v735 = vadd.f32 %v653, %v705
      %v736 = vadd.f32 %v655, %v707
      %v737 = vadd.f32 %v657, %v709
      %v738 = vadd.f32 %v659, %v711
      %v739 = vadd.f32 %v661, %v713
      %740 = vrot.lane.b32.xlu0 %v611, 64
      %v741 = vpop.permute.xlu0 %740
      %742 = vrot.lane.b32.xlu0 %v613, 64
      %v743 = vpop.permute.xlu0 %742
      %744 = vrot.lane.b32.xlu0 %v615, 64
      %v745 = vpop.permute.xlu0 %744
      %746 = vrot.lane.b32.xlu0 %v617, 64
      %v747 = vpop.permute.xlu0 %746
      %748 = vrot.lane.b32.xlu0 %v619, 64
      %v749 = vpop.permute.xlu0 %748
      %750 = vrot.lane.b32.xlu0 %v621, 64
      %v751 = vpop.permute.xlu0 %750
      %752 = vrot.lane.b32.xlu0 %v623, 64
      %v753 = vpop.permute.xlu0 %752
      %754 = vrot.lane.b32.xlu0 %v625, 64
      %v755 = vpop.permute.xlu0 %754
      %756 = vrot.lane.b32.xlu0 %v627, 64
      %v757 = vpop.permute.xlu0 %756
      %758 = vrot.lane.b32.xlu0 %v629, 64
      %v759 = vpop.permute.xlu0 %758
      %760 = vrot.lane.b32.xlu0 %v631, 64
      %v761 = vpop.permute.xlu0 %760
      %762 = vrot.lane.b32.xlu0 %v633, 64
      %v763 = vpop.permute.xlu0 %762
      %764 = vrot.lane.b32.xlu0 %v635, 64
      %v765 = vpop.permute.xlu0 %764
      %766 = vrot.lane.b32.xlu0 %v637, 64
      %v767 = vpop.permute.xlu0 %766
      %768 = vrot.lane.b32.xlu0 %v639, 64
      %v769 = vpop.permute.xlu0 %768
      %770 = vrot.lane.b32.xlu0 %v641, 64
      %v771 = vpop.permute.xlu0 %770
      %772 = vrot.lane.b32.xlu0 %v643, 64
      %v773 = vpop.permute.xlu0 %772
      %774 = vrot.lane.b32.xlu0 %v645, 64
      %v775 = vpop.permute.xlu0 %774
      %776 = vrot.lane.b32.xlu0 %v647, 64
      %v777 = vpop.permute.xlu0 %776
      %778 = vrot.lane.b32.xlu0 %v649, 64
      %v779 = vpop.permute.xlu0 %778
      %780 = vrot.lane.b32.xlu0 %v651, 64
      %v781 = vpop.permute.xlu0 %780
      %782 = vrot.lane.b32.xlu0 %v653, 64
      %v783 = vpop.permute.xlu0 %782
      %784 = vrot.lane.b32.xlu0 %v655, 64
      %v785 = vpop.permute.xlu0 %784
      %786 = vrot.lane.b32.xlu0 %v657, 64
      %v787 = vpop.permute.xlu0 %786
      %788 = vrot.lane.b32.xlu0 %v659, 64
      %v789 = vpop.permute.xlu0 %788
      %790 = vrot.lane.b32.xlu0 %v661, 64
      %v791 = vpop.permute.xlu0 %790
      %v792 = vadd.f32 %v714, %v741
      %v793 = vadd.f32 %v715, %v743
      %v794 = vadd.f32 %v716, %v745
      %v795 = vadd.f32 %v717, %v747
      %v796 = vadd.f32 %v718, %v749
      %v797 = vadd.f32 %v719, %v751
      %v798 = vadd.f32 %v720, %v753
      %v799 = vadd.f32 %v721, %v755
      %v800 = vadd.f32 %v722, %v757
      %v801 = vadd.f32 %v723, %v759
      %v802 = vadd.f32 %v724, %v761
      %v803 = vadd.f32 %v725, %v763
      %v804 = vadd.f32 %v726, %v765
      %v805 = vadd.f32 %v727, %v767
      %v806 = vadd.f32 %v728, %v769
      %v807 = vadd.f32 %v729, %v771
      %v808 = vadd.f32 %v730, %v773
      %v809 = vadd.f32 %v731, %v775
      %v810 = vadd.f32 %v732, %v777
      %v811 = vadd.f32 %v733, %v779
      %v812 = vadd.f32 %v734, %v781
      %v813 = vadd.f32 %v735, %v783
      %v814 = vadd.f32 %v736, %v785
      %v815 = vadd.f32 %v737, %v787
      %v816 = vadd.f32 %v738, %v789
      %v817 = vadd.f32 %v739, %v791
      %818 = vrot.lane.b32.xlu0 %v611, 96
      %v819 = vpop.permute.xlu0 %818
      %820 = vrot.lane.b32.xlu0 %v613, 96
      %v821 = vpop.permute.xlu0 %820
      %822 = vrot.lane.b32.xlu0 %v615, 96
      %v823 = vpop.permute.xlu0 %822
      %824 = vrot.lane.b32.xlu0 %v617, 96
      %v825 = vpop.permute.xlu0 %824
      %826 = vrot.lane.b32.xlu0 %v619, 96
      %v827 = vpop.permute.xlu0 %826
      %828 = vrot.lane.b32.xlu0 %v621, 96
      %v829 = vpop.permute.xlu0 %828
      %830 = vrot.lane.b32.xlu0 %v623, 96
      %v831 = vpop.permute.xlu0 %830
      %832 = vrot.lane.b32.xlu0 %v625, 96
      %v833 = vpop.permute.xlu0 %832
      %834 = vrot.lane.b32.xlu0 %v627, 96
      %v835 = vpop.permute.xlu0 %834
      %836 = vrot.lane.b32.xlu0 %v629, 96
      %v837 = vpop.permute.xlu0 %836
      %838 = vrot.lane.b32.xlu0 %v631, 96
      %v839 = vpop.permute.xlu0 %838
      %840 = vrot.lane.b32.xlu0 %v633, 96
      %v841 = vpop.permute.xlu0 %840
      %842 = vrot.lane.b32.xlu0 %v635, 96
      %v843 = vpop.permute.xlu0 %842
      %844 = vrot.lane.b32.xlu0 %v637, 96
      %v845 = vpop.permute.xlu0 %844
      %846 = vrot.lane.b32.xlu0 %v639, 96
      %v847 = vpop.permute.xlu0 %846
      %848 = vrot.lane.b32.xlu0 %v641, 96
      %v849 = vpop.permute.xlu0 %848
      %850 = vrot.lane.b32.xlu0 %v643, 96
      %v851 = vpop.permute.xlu0 %850
      %852 = vrot.lane.b32.xlu0 %v645, 96
      %v853 = vpop.permute.xlu0 %852
      %854 = vrot.lane.b32.xlu0 %v647, 96
      %v855 = vpop.permute.xlu0 %854
      %856 = vrot.lane.b32.xlu0 %v649, 96
      %v857 = vpop.permute.xlu0 %856
      %858 = vrot.lane.b32.xlu0 %v651, 96
      %v859 = vpop.permute.xlu0 %858
      %860 = vrot.lane.b32.xlu0 %v653, 96
      %v861 = vpop.permute.xlu0 %860
      %862 = vrot.lane.b32.xlu0 %v655, 96
      %v863 = vpop.permute.xlu0 %862
      %864 = vrot.lane.b32.xlu0 %v657, 96
      %v865 = vpop.permute.xlu0 %864
      %866 = vrot.lane.b32.xlu0 %v659, 96
      %v867 = vpop.permute.xlu0 %866
      %868 = vrot.lane.b32.xlu0 %v661, 96
      %v869 = vpop.permute.xlu0 %868
      %v870 = vadd.f32 %v792, %v819
      %v871 = vadd.f32 %v793, %v821
      %v872 = vadd.f32 %v794, %v823
      %v873 = vadd.f32 %v795, %v825
      %v874 = vadd.f32 %v796, %v827
      %v875 = vadd.f32 %v797, %v829
      %v876 = vadd.f32 %v798, %v831
      %v877 = vadd.f32 %v799, %v833
      %v878 = vadd.f32 %v800, %v835
      %v879 = vadd.f32 %v801, %v837
      %v880 = vadd.f32 %v802, %v839
      %v881 = vadd.f32 %v803, %v841
      %v882 = vadd.f32 %v804, %v843
      %v883 = vadd.f32 %v805, %v845
      %v884 = vadd.f32 %v806, %v847
      %v885 = vadd.f32 %v807, %v849
      %v886 = vadd.f32 %v808, %v851
      %v887 = vadd.f32 %v809, %v853
      %v888 = vadd.f32 %v810, %v855
      %v889 = vadd.f32 %v811, %v857
      %v890 = vadd.f32 %v812, %v859
      %v891 = vadd.f32 %v813, %v861
      %v892 = vadd.f32 %v814, %v863
      %v893 = vadd.f32 %v815, %v865
      %v894 = vadd.f32 %v816, %v867
      %v895 = vadd.f32 %v817, %v869
      %v896 = vmul.f32 %v870, 0.25
      %v897 = vmul.f32 %v871, 0.25
      %v898 = vmul.f32 %v872, 0.25
      %v899 = vmul.f32 %v873, 0.25
      %v900 = vmul.f32 %v874, 0.25
      %v901 = vmul.f32 %v875, 0.25
      %v902 = vmul.f32 %v876, 0.25
      %v903 = vmul.f32 %v877, 0.25
      %v904 = vmul.f32 %v878, 0.25
      %v905 = vmul.f32 %v879, 0.25
      %v906 = vmul.f32 %v880, 0.25
      %v907 = vmul.f32 %v881, 0.25
      %v908 = vmul.f32 %v882, 0.25
      %v909 = vmul.f32 %v883, 0.25
      %v910 = vmul.f32 %v884, 0.25
      %v911 = vmul.f32 %v885, 0.25
      %v912 = vmul.f32 %v886, 0.25
      %v913 = vmul.f32 %v887, 0.25
      %v914 = vmul.f32 %v888, 0.25
      %v915 = vmul.f32 %v889, 0.25
      %v916 = vmul.f32 %v890, 0.25
      %v917 = vmul.f32 %v891, 0.25
      %v918 = vmul.f32 %v892, 0.25
      %v919 = vmul.f32 %v893, 0.25
      %v920 = vmul.f32 %v894, 0.25
      %v921 = vmul.f32 %v895, 0.25
      %v922 = vpack.c.bf16 %v897, %v896
      %v923 = vpack.c.bf16 %v899, %v898
      %v924 = vpack.c.bf16 %v901, %v900
      %v925 = vpack.c.bf16 %v903, %v902
      %v926 = vpack.c.bf16 %v905, %v904
      %v927 = vpack.c.bf16 %v907, %v906
      %v928 = vpack.c.bf16 %v909, %v908
      %v929 = vpack.c.bf16 %v911, %v910
      %v930 = vpack.c.bf16 %v913, %v912
      %v931 = vpack.c.bf16 %v915, %v914
      %v932 = vpack.c.bf16 %v917, %v916
      %v933 = vpack.c.bf16 %v919, %v918
      %v934 = vpack.c.bf16 %v921, %v920
      %v948 = vunpack.c.l.b16 %v922
      %v949 = vunpack.c.h.b16 %v922
      %v950 = vunpack.c.l.b16 %v923
      %v951 = vunpack.c.h.b16 %v923
      %v952 = vunpack.c.l.b16 %v924
      %v953 = vunpack.c.h.b16 %v924
      %v954 = vunpack.c.l.b16 %v925
      %v955 = vunpack.c.h.b16 %v925
      %v956 = vunpack.c.l.b16 %v926
      %v957 = vunpack.c.h.b16 %v926
      %v958 = vunpack.c.l.b16 %v927
      %v959 = vunpack.c.h.b16 %v927
      %v960 = vunpack.c.l.b16 %v928
      %v961 = vunpack.c.h.b16 %v928
      %v962 = vunpack.c.l.b16 %v929
      %v963 = vunpack.c.h.b16 %v929
      %v964 = vunpack.c.l.b16 %v930
      %v965 = vunpack.c.h.b16 %v930
      %v966 = vunpack.c.l.b16 %v931
      %v967 = vunpack.c.h.b16 %v931
      %v968 = vunpack.c.l.b16 %v932
      %v969 = vunpack.c.h.b16 %v932
      %v970 = vunpack.c.l.b16 %v933
      %v971 = vunpack.c.h.b16 %v933
      %v972 = vunpack.c.l.b16 %v934
      %v973 = vunpack.c.h.b16 %v934
      %v974 = vpack.c.b16 %v948, %v948
      %v975 = vpack.c.b16 %v949, %v949
      %v976 = vpack.c.b16 %v950, %v950
      %v977 = vpack.c.b16 %v951, %v951
      %v978 = vpack.c.b16 %v952, %v952
      %v979 = vpack.c.b16 %v953, %v953
      %v980 = vpack.c.b16 %v954, %v954
      %v981 = vpack.c.b16 %v955, %v955
      %v982 = vpack.c.b16 %v956, %v956
      %v983 = vpack.c.b16 %v957, %v957
      %v984 = vpack.c.b16 %v958, %v958
      %v985 = vpack.c.b16 %v959, %v959
      %v986 = vpack.c.b16 %v960, %v960
      %v987 = vpack.c.b16 %v961, %v961
      %v988 = vpack.c.b16 %v962, %v962
      %v989 = vpack.c.b16 %v963, %v963
      %v990 = vpack.c.b16 %v964, %v964
      %v991 = vpack.c.b16 %v965, %v965
      %v992 = vpack.c.b16 %v966, %v966
      %v993 = vpack.c.b16 %v967, %v967
      %v994 = vpack.c.b16 %v968, %v968
      %v995 = vpack.c.b16 %v969, %v969
      %v996 = vpack.c.b16 %v970, %v970
      %v997 = vpack.c.b16 %v971, %v971
      %v998 = vpack.c.b16 %v972, %v972
      %v999 = vpack.c.b16 %v973, %v973
      %1026 = vst [vmem:[%s172] sm:$0xf] %v974
      %1027 = vst [vmem:[%s172 + $0x4] sm:$0xf] %v975
      %1028 = vst [vmem:[%s172 + $0x8] sm:$0xf] %v976
      %1029 = vst [vmem:[%s172 + $0xc] sm:$0xf] %v977
      %1030 = vst [vmem:[%s172 + $0x10] sm:$0xf] %v978
      %1031 = vst [vmem:[%s172 + $0x14] sm:$0xf] %v979
      %1032 = vst [vmem:[%s172 + $0x18] sm:$0xf] %v980
      %1033 = vst [vmem:[%s172 + $0x1c] sm:$0xf] %v981
      %1034 = vst [vmem:[%s172 + $0x20] sm:$0xf] %v982
      %1035 = vst [vmem:[%s172 + $0x24] sm:$0xf] %v983
      %1036 = vst [vmem:[%s172 + $0x28] sm:$0xf] %v984
      %1037 = vst [vmem:[%s172 + $0x2c] sm:$0xf] %v985
      %1038 = vst [vmem:[%s172 + $0x30] sm:$0xf] %v986
      %1039 = vst [vmem:[%s172 + $0x34] sm:$0xf] %v987
      %1040 = vst [vmem:[%s172 + $0x38] sm:$0xf] %v988
      %1041 = vst [vmem:[%s172 + $0x3c] sm:$0xf] %v989
      %1042 = vst [vmem:[%s172 + $0x40] sm:$0xf] %v990
      %1043 = vst [vmem:[%s172 + $0x44] sm:$0xf] %v991
      %1044 = vst [vmem:[%s172 + $0x48] sm:$0xf] %v992
      %1045 = vst [vmem:[%s172 + $0x4c] sm:$0xf] %v993
      %1046 = vst [vmem:[%s172 + $0x50] sm:$0xf] %v994
      %1047 = vst [vmem:[%s172 + $0x54] sm:$0xf] %v995
      %1048 = vst [vmem:[%s172 + $0x58] sm:$0xf] %v996
      %1049 = vst [vmem:[%s172 + $0x5c] sm:$0xf] %v997
      %1050 = vst [vmem:[%s172 + $0x60] sm:$0xf] %v998
      %1051 = vst [vmem:[%s172 + $0x64] sm:$0xf] %v999
      %s1052 = smul.u32 26, %s14
      %p1053 = scmp.lt.s32.totalorder %s1052, 51
      %s1054 = scalar_select %p1053, %s1052, 51
      %s1055 = smul.addr %s1054, 4
      %s1056 = scalar_lea.vmem %s3, %s1055
      // Predicated region
      $region33: #{lenet_forward.3} parent=31 // pred_check
        %p1057 = pneg %p100
      $region34: #{lenet_forward.3} parent=31 // pred_check_branch
        %1059 = sbr.rel (%p1057) target = $region36
      $region35: #{lenet_forward.3} parent=31 // pred_region
        %s1060 = smul.u32 26, %s14
      $region36: #{lenet_forward.3} parent=31 // pred_fallthru
        _
    $region32: #{lenet_forward.3} parent=5 // pred_fallthru
      _
    %p1061 = scmp.le.s32.totalorder 2, %s9
    // Predicated region
    $region37: #{lenet_forward.3} parent=5 // pred_check
      %p1062 = pneg %p1061
    $region38: #{lenet_forward.3} parent=5 // pred_check_branch
      %1064 = sbr.rel (%p1062) target = $region40
    $region39: #{lenet_forward.3} parent=5 // pred_region
      %s1065 = ssub.s32 %s9, 2
      // Predicated region
      $region41: #{lenet_forward.3} parent=39 // pred_check
        %p1066 = pneg %p106
      $region42: #{lenet_forward.3} parent=39 // pred_check_branch
        %1068 = sbr.rel (%p1066) target = $region44
      $region43: #{lenet_forward.3} parent=39 // pred_region
        %s1069 = smul.u32 26, %s15
        %p1070 = scmp.lt.s32.totalorder %s1069, 51
        %s1071 = scalar_select %p1070, %s1069, 51
        %s1072 = smul.addr %s1071, 4
        %s1073 = scalar_lea.vmem %s3, %s1072
      $region44: #{lenet_forward.3} parent=39 // pred_fallthru
        _
    $region40: #{lenet_forward.3} parent=5 // pred_fallthru
      _
  $region6: #{lenet_forward.3} parent=0 // loop_footer
    %s13 = sadd.s32 1, %s9
  $region7: #{lenet_forward.3} parent=0 // loop_footer_branch
    %8 = sbr.rel target = $region3
  $region8: #{lenet_forward.3} parent=0 // loop_exit
    _

// kernel: lenet_forward.4
$region0: #{lenet_forward.4}
  #allocation0 [shape = 'u32[]', space=smem, size = 0x4, offset = 0x4, fixed_abs, tag = 'smem constant byte address 0x4 - core index']
  #allocation1 [shape = 'u32[144,128]{1,0:T(1,128)}', space=vmem, size = 0x12000, scoped, tag = 'internal scratch']
  %s0 = inlined_call_operand.vmem [shape: bf16[64,600], index: 0, kind: input, shape index: {}]
  %s1 = inlined_call_operand.vmem [shape: bf16[600,128], index: 1, kind: input, shape index: {}]
  %s2 = inlined_call_operand.vmem [shape: f32[1,128], index: 2, kind: input, shape index: {}]
  %s3 = inlined_call_operand.vmem [shape: bf16[64,128], index: 3, kind: output, shape index: {}]
  %s4 = sld [smem:[#allocation0]]
  $region45: #{lenet_forward.4} parent=0
    _
  %s6 = ssub.s32 1, %s4
  %s7 = scalar_select 0, %s6, %s4
  loop: start=0, step=1, limit=4
  $region2: #{lenet_forward.4} parent=0 // loop_pre_header
    _
  $region3: #{lenet_forward.4} parent=0 // loop_header
    %s9 = sphi 0, %s13
    %p10 = scmp.ge.s32.totalorder %s9, 4
    %s19 = sphi 0, %s21
    %s22 = sphi 0, %s19
    %s23 = sphi 0, %s22
    %s39 = sphi 0, %s23
    %s43 = sphi 0, %s43
    %s45 = sphi 0, %s43
    %s46 = sphi 0, %s45
    %s60 = sphi 0, %s46
    %s64 = sphi 0, %s64
    %s66 = sphi 0, %s64
    %s67 = sphi 0, %s66
    %s81 = sphi 0, %s67
    %s87 = sphi 0, %s89
    %s90 = sphi 0, %s87
    %s91 = sphi 0, %s90
    %s107 = sphi 0, %s91
  $region4: #{lenet_forward.4} parent=0 // loop_header_branch
    %12 = sbr.rel (%p10) target = $region8
  $region5: #{lenet_forward.4} parent=0 // loop_body
    %s14 = ssub.s32 %s9, 1
    %s15 = ssub.s32 %s9, 2
    %s16 = sadd.s32 %s9, 1
    %s17 = ssub.s32 %s9, %s16
    %p18 = scmp.eq.s32.totalorder %s17, 0
    %s20 = sadd.s32 %s19, 1
    %s21 = scalar_select %p18, %s19, %s20
    %p24 = pneg %p18
    %p25 = scmp.eq.s32.totalorder %s9, 1
    %p26 = por %p24, %p25
    %p27 = scmp.ne.s32.totalorder %s19, %s22
    %p28 = scmp.eq.s32.totalorder %s9, 0
    %p29 = por %p27, %p28
    %p30 = scmp.ne.s32.totalorder %s19, %s22
    %p31 = scmp.eq.s32.totalorder %s14, 1
    %p32 = por %p30, %p31
    %p33 = scmp.ne.s32.totalorder %s22, %s23
    %p34 = scmp.eq.s32.totalorder %s14, 0
    %p35 = por %p33, %p34
    %p36 = scmp.ne.s32.totalorder %s22, %s23
    %p37 = scmp.eq.s32.totalorder %s15, 1
    %p38 = por %p36, %p37
    %p40 = scmp.ne.s32.totalorder %s23, %s39
    %p41 = scmp.eq.s32.totalorder %s15, 0
    %p42 = por %p40, %p41
    %s44 = sadd.s32 %s43, 1
    %p47 = scmp.eq.s32.totalorder %s9, 1
    %p48 = scmp.ne.s32.totalorder %s43, %s45
    %p49 = scmp.eq.s32.totalorder %s9, 0
    %p50 = por %p48, %p49
    %p51 = scmp.ne.s32.totalorder %s43, %s45
    %p52 = scmp.eq.s32.totalorder %s14, 1
    %p53 = por %p51, %p52
    %p54 = scmp.ne.s32.totalorder %s45, %s46
    %p55 = scmp.eq.s32.totalorder %s14, 0
    %p56 = por %p54, %p55
    %p57 = scmp.ne.s32.totalorder %s45, %s46
    %p58 = scmp.eq.s32.totalorder %s15, 1
    %p59 = por %p57, %p58
    %p61 = scmp.ne.s32.totalorder %s46, %s60
    %p62 = scmp.eq.s32.totalorder %s15, 0
    %p63 = por %p61, %p62
    %s65 = sadd.s32 %s64, 1
    %p68 = scmp.eq.s32.totalorder %s9, 1
    %p69 = scmp.ne.s32.totalorder %s64, %s66
    %p70 = scmp.eq.s32.totalorder %s9, 0
    %p71 = por %p69, %p70
    %p72 = scmp.ne.s32.totalorder %s64, %s66
    %p73 = scmp.eq.s32.totalorder %s14, 1
    %p74 = por %p72, %p73
    %p75 = scmp.ne.s32.totalorder %s66, %s67
    %p76 = scmp.eq.s32.totalorder %s14, 0
    %p77 = por %p75, %p76
    %p78 = scmp.ne.s32.totalorder %s66, %s67
    %p79 = scmp.eq.s32.totalorder %s15, 1
    %p80 = por %p78, %p79
    %p82 = scmp.ne.s32.totalorder %s67, %s81
    %p83 = scmp.eq.s32.totalorder %s15, 0
    %p84 = por %p82, %p83
    %s85 = ssub.s32 %s9, %s16
    %p86 = scmp.eq.s32.totalorder %s85, 0
    %s88 = sadd.s32 %s87, 1
    %s89 = scalar_select %p86, %s87, %s88
    %p92 = pneg %p86
    %p93 = scmp.eq.s32.totalorder %s9, 1
    %p94 = por %p92, %p93
    %p95 = scmp.ne.s32.totalorder %s87, %s90
    %p96 = scmp.eq.s32.totalorder %s9, 0
    %p97 = por %p95, %p96
    %p98 = scmp.ne.s32.totalorder %s87, %s90
    %p99 = scmp.eq.s32.totalorder %s14, 1
    %p100 = por %p98, %p99
    %p101 = scmp.ne.s32.totalorder %s90, %s91
    %p102 = scmp.eq.s32.totalorder %s14, 0
    %p103 = por %p101, %p102
    %p104 = scmp.ne.s32.totalorder %s90, %s91
    %p105 = scmp.eq.s32.totalorder %s15, 1
    %p106 = por %p104, %p105
    %p108 = scmp.ne.s32.totalorder %s91, %s107
    %p109 = scmp.eq.s32.totalorder %s15, 0
    %p110 = por %p108, %p109
    %p111 = scmp.le.s32.totalorder 1, %s9
    %p112 = scmp.lt.s32.totalorder %s9, 3
    %p113 = pnand %p111, %p112
    %p114 = pneg %p113
    // Predicated region
    $region9: #{lenet_forward.4} parent=5 // pred_check
      _
    $region10: #{lenet_forward.4} parent=5 // pred_check_branch
      %116 = sbr.rel (%p113) target = $region12
    $region11: #{lenet_forward.4} parent=5 // pred_region
      %s117 = ssub.s32 %s9, 1
      // Predicated region
      $region13: #{lenet_forward.4} parent=11 // pred_check
        %p118 = pneg %p56
      $region14: #{lenet_forward.4} parent=11 // pred_check_branch
        %120 = sbr.rel (%p118) target = $region16
      $region15: #{lenet_forward.4} parent=11 // pred_region
        _
      $region16: #{lenet_forward.4} parent=11 // pred_fallthru
        _
      // Predicated region
      $region17: #{lenet_forward.4} parent=11 // pred_check
        %p121 = pneg %p77
      $region18: #{lenet_forward.4} parent=11 // pred_check_branch
        %123 = sbr.rel (%p121) target = $region20
      $region19: #{lenet_forward.4} parent=11 // pred_region
        _
      $region20: #{lenet_forward.4} parent=11 // pred_fallthru
        _
    $region12: #{lenet_forward.4} parent=5 // pred_fallthru
      _
    %p124 = scmp.lt.s32.totalorder %s9, 2
    // Predicated region
    $region21: #{lenet_forward.4} parent=5 // pred_check
      %p125 = pneg %p124
    $region22: #{lenet_forward.4} parent=5 // pred_check_branch
      %127 = sbr.rel (%p125) target = $region24
    $region23: #{lenet_forward.4} parent=5 // pred_region
      // Predicated region
      $region25: #{lenet_forward.4} parent=23 // pred_check
        %p128 = pneg %p29
      $region26: #{lenet_forward.4} parent=23 // pred_check_branch
        %130 = sbr.rel (%p128) target = $region28
      $region27: #{lenet_forward.4} parent=23 // pred_region
        %s131 = smul.u32 4, %s9
        %p132 = scmp.lt.s32.totalorder %s131, 7
        %s133 = scalar_select %p132, %s131, 7
        %s134 = smul.addr %s133, 5
        %s135 = smul.addr %s134, 4
        %s136 = scalar_lea.vmem %s0, %s135
        %s137 = smul.u32 4, %s9
      $region28: #{lenet_forward.4} parent=23 // pred_fallthru
        _
    $region24: #{lenet_forward.4} parent=5 // pred_fallthru
      _
    %p138 = scmp.le.s32.totalorder 1, %s9
    %p139 = scmp.lt.s32.totalorder %s9, 3
    %p140 = pnand %p138, %p139
    %p141 = pneg %p140
    // Predicated region
    $region29: #{lenet_forward.4} parent=5 // pred_check
      _
    $region30: #{lenet_forward.4} parent=5 // pred_check_branch
      %143 = sbr.rel (%p140) target = $region32
    $region31: #{lenet_forward.4} parent=5 // pred_region
      %s144 = ssub.s32 %s9, 1
      %s145 = smul.u32 4, %s14
      %p146 = scmp.lt.s32.totalorder %s145, 7
      %s147 = scalar_select %p146, %s145, 7
      %s148 = smul.addr %s147, 5
      %s149 = smul.addr %s148, 4
      %s150 = scalar_lea.vmem %s0, %s149
      %p151 = pneg %p35
      %p152 = pneg %p32
      %p153 = pneg %p56
      %p154 = pneg %p53
      %p155 = pneg %p77
      %p156 = pneg %p74
      %p157 = pneg %p103
      %p158 = pneg %p100
      %s159 = smul.u32 4, %s14
      %p160 = scmp.lt.s32.totalorder %s159, 7
      %s161 = scalar_select %p160, %s159, 7
      %s162 = smul.addr %s161, 4
      %s163 = scalar_lea.vmem %s3, %s162
      %s164 = smul.u32 4, %s14
      %p165 = scmp.lt.s32.totalorder %s164, 7
      %s166 = scalar_select %p165, %s164, 7
      %s167 = smul.addr %s166, 5
      %s168 = smul.addr %s167, 4
      %s169 = scalar_lea.vmem %s0, %s168
      %s170 = smul.u32 4, %s14
      %s171 = smul.u32 4, %s14
      %p172 = scmp.lt.s32.totalorder %s171, 7
      %s173 = scalar_select %p172, %s171, 7
      %s174 = smul.addr %s173, 4
      %s175 = scalar_lea.vmem %s3, %s174
      %s176 = smul.u32 4, %s14
      %v178 = vld [vmem:[%s169] sm:$0xff]
      %v179 = vld [vmem:[%s169 + $0x8] sm:$0xff]
      %v180 = vld [vmem:[%s169 + $0x10] sm:$0xf]
      %v181 = vld [vmem:[%s169 + $0x14] sm:$0xff]
      %v182 = vld [vmem:[%s169 + $0x1c] sm:$0xff]
      %v183 = vld [vmem:[%s169 + $0x24] sm:$0xf]
      %v184 = vld [vmem:[%s169 + $0x28] sm:$0xff]
      %v185 = vld [vmem:[%s169 + $0x30] sm:$0xff]
      %v186 = vld [vmem:[%s169 + $0x38] sm:$0xf]
      %v187 = vld [vmem:[%s169 + $0x3c] sm:$0xff]
      %v188 = vld [vmem:[%s169 + $0x44] sm:$0xff]
      %v189 = vld [vmem:[%s169 + $0x4c] sm:$0xf]
      %v190 = vld [vmem:[%s1] sm:$0xf]
      %v191 = vld [vmem:[%s1 + $0x4] sm:$0xf]
      %v192 = vld [vmem:[%s1 + $0x8] sm:$0xf]
      %v193 = vld [vmem:[%s1 + $0xc] sm:$0xf]
      %v194 = vld [vmem:[%s1 + $0x10] sm:$0xf]
      %v195 = vld [vmem:[%s1 + $0x14] sm:$0xf]
      %v196 = vld [vmem:[%s1 + $0x18] sm:$0xf]
      %v197 = vld [vmem:[%s1 + $0x1c] sm:$0xf]
      %v198 = vld [vmem:[%s1 + $0x20] sm:$0xf]
      %v199 = vld [vmem:[%s1 + $0x24] sm:$0xf]
      %v200 = vld [vmem:[%s1 + $0x28] sm:$0xf]
      %v201 = vld [vmem:[%s1 + $0x2c] sm:$0xf]
      %v202 = vld [vmem:[%s1 + $0x30] sm:$0xf]
      %v203 = vld [vmem:[%s1 + $0x34] sm:$0xf]
      %v204 = vld [vmem:[%s1 + $0x38] sm:$0xf]
      %v205 = vld [vmem:[%s1 + $0x3c] sm:$0xf]
      %v206 = vld [vmem:[%s1 + $0x40] sm:$0xf]
      %v207 = vld [vmem:[%s1 + $0x44] sm:$0xf]
      %v208 = vld [vmem:[%s1 + $0x48] sm:$0xf]
      %v209 = vld [vmem:[%s1 + $0x4c] sm:$0xf]
      %v210 = vld [vmem:[%s1 + $0x50] sm:$0xf]
      %v211 = vld [vmem:[%s1 + $0x54] sm:$0xf]
      %v212 = vld [vmem:[%s1 + $0x58] sm:$0xf]
      %v213 = vld [vmem:[%s1 + $0x5c] sm:$0xf]
      %v214 = vld [vmem:[%s1 + $0x60] sm:$0xf]
      %v215 = vld [vmem:[%s1 + $0x64] sm:$0xf]
      %v216 = vld [vmem:[%s1 + $0x68] sm:$0xf]
      %v217 = vld [vmem:[%s1 + $0x6c] sm:$0xf]
      %v218 = vld [vmem:[%s1 + $0x70] sm:$0xf]
      %v219 = vld [vmem:[%s1 + $0x74] sm:$0xf]
      %v220 = vld [vmem:[%s1 + $0x78] sm:$0xf]
      %v221 = vld [vmem:[%s1 + $0x7c] sm:$0xf]
      %v222 = vld [vmem:[%s1 + $0x80] sm:$0xf]
      %v223 = vld [vmem:[%s1 + $0x84] sm:$0xf]
      %v224 = vld [vmem:[%s1 + $0x88] sm:$0xf]
      %v225 = vld [vmem:[%s1 + $0x8c] sm:$0xf]
      %v226 = vld [vmem:[%s1 + $0x90] sm:$0xf]
      %v227 = vld [vmem:[%s1 + $0x94] sm:$0xf]
      %v228 = vld [vmem:[%s1 + $0x98] sm:$0xf]
      %v229 = vld [vmem:[%s1 + $0x9c] sm:$0xf]
      %v230 = vld [vmem:[%s1 + $0xa0] sm:$0xf]
      %v231 = vld [vmem:[%s1 + $0xa4] sm:$0xf]
      %v232 = vld [vmem:[%s1 + $0xa8] sm:$0xf]
      %v233 = vld [vmem:[%s1 + $0xac] sm:$0xf]
      %v234 = vld [vmem:[%s1 + $0xb0] sm:$0xf]
      %v235 = vld [vmem:[%s1 + $0xb4] sm:$0xf]
      %v236 = vld [vmem:[%s1 + $0xb8] sm:$0xf]
      %v237 = vld [vmem:[%s1 + $0xbc] sm:$0xf]
      %v238 = vld [vmem:[%s1 + $0xc0] sm:$0xf]
      %v239 = vld [vmem:[%s1 + $0xc4] sm:$0xf]
      %v240 = vld [vmem:[%s1 + $0xc8] sm:$0xf]
      %v241 = vld [vmem:[%s1 + $0xcc] sm:$0xf]
      %v242 = vld [vmem:[%s1 + $0xd0] sm:$0xf]
      %v243 = vld [vmem:[%s1 + $0xd4] sm:$0xf]
      %v244 = vld [vmem:[%s1 + $0xd8] sm:$0xf]
      %v245 = vld [vmem:[%s1 + $0xdc] sm:$0xf]
      %v246 = vld [vmem:[%s1 + $0xe0] sm:$0xf]
      %v247 = vld [vmem:[%s1 + $0xe4] sm:$0xf]
      %v248 = vld [vmem:[%s1 + $0xe8] sm:$0xf]
      %v249 = vld [vmem:[%s1 + $0xec] sm:$0xf]
      %v250 = vld [vmem:[%s1 + $0xf0] sm:$0xf]
      %v251 = vld [vmem:[%s1 + $0xf4] sm:$0xf]
      %v252 = vld [vmem:[%s1 + $0xf8] sm:$0xf]
      %v253 = vld [vmem:[%s1 + $0xfc] sm:$0xf]
      %v254 = vld [vmem:[%s1 + $0x100] sm:$0xf]
      %v255 = vld [vmem:[%s1 + $0x104] sm:$0xf]
      %v256 = vld [vmem:[%s1 + $0x108] sm:$0xf]
      %v257 = vld [vmem:[%s1 + $0x10c] sm:$0xf]
      %v258 = vld [vmem:[%s1 + $0x110] sm:$0xf]
      %v259 = vld [vmem:[%s1 + $0x114] sm:$0xf]
      %v260 = vld [vmem:[%s1 + $0x118] sm:$0xf]
      %v261 = vld [vmem:[%s1 + $0x11c] sm:$0xf]
      %v262 = vld [vmem:[%s1 + $0x120] sm:$0xf]
      %v263 = vld [vmem:[%s1 + $0x124] sm:$0xf]
      %v264 = vld [vmem:[%s1 + $0x128] sm:$0xf]
      %v265 = vld [vmem:[%s2] sm:$0x1]
      %v267 = vlaneseq
      %v268 = vshrl.u32 %v267, 7
      %v269 = vsub.s32 0, %v268
      %v270 = vrot.slane %v265, %v269
      %v284 = vunpack.c.l.b16 %v178
      %v285 = vunpack.c.h.b16 %v178
      %v286 = vunpack.c.l.b16 %v179
      %v287 = vunpack.c.h.b16 %v179
      %v288 = vunpack.c.l.b16 %v180
      %v289 = vunpack.c.l.b16 %v181
      %v290 = vunpack.c.h.b16 %v181
      %v291 = vunpack.c.l.b16 %v182
      %v292 = vunpack.c.h.b16 %v182
      %v293 = vunpack.c.l.b16 %v183
      %v294 = vunpack.c.l.b16 %v184
      %v295 = vunpack.c.h.b16 %v184
      %v296 = vunpack.c.l.b16 %v185
      %v297 = vunpack.c.h.b16 %v185
      %v298 = vunpack.c.l.b16 %v186
      %v299 = vunpack.c.l.b16 %v187
      %v300 = vunpack.c.h.b16 %v187
      %v301 = vunpack.c.l.b16 %v188
      %v302 = vunpack.c.h.b16 %v188
      %v303 = vunpack.c.l.b16 %v189
      %v304 = vpack.c.b16 %v289, %v284
      %v305 = vpack.c.b16 %v290, %v285
      %v306 = vpack.c.b16 %v291, %v286
      %v307 = vpack.c.b16 %v292, %v287
      %v308 = vpack.c.b16 %v293, %v288
      %v309 = vpack.c.b16 %v299, %v294
      %v310 = vpack.c.b16 %v300, %v295
      %v311 = vpack.c.b16 %v301, %v296
      %v312 = vpack.c.b16 %v302, %v297
      %v313 = vpack.c.b16 %v303, %v298
      %v397 = vunpack.c.l.b16 %v190
      %v398 = vunpack.c.l.b16 %v191
      %v399 = vunpack.c.l.b16 %v192
      %v400 = vunpack.c.l.b16 %v193
      %v401 = vunpack.c.l.b16 %v194
      %v402 = vunpack.c.l.b16 %v195
      %v403 = vunpack.c.l.b16 %v196
      %v404 = vunpack.c.l.b16 %v197
      %v405 = vunpack.c.l.b16 %v198
      %v406 = vunpack.c.l.b16 %v199
      %v407 = vunpack.c.l.b16 %v200
      %v408 = vunpack.c.l.b16 %v201
      %v409 = vunpack.c.l.b16 %v202
      %v410 = vunpack.c.l.b16 %v203
      %v411 = vunpack.c.l.b16 %v204
      %v412 = vunpack.c.l.b16 %v205
      %v413 = vunpack.c.l.b16 %v206
      %v414 = vunpack.c.l.b16 %v207
      %v415 = vunpack.c.l.b16 %v208
      %v416 = vunpack.c.l.b16 %v209
      %v417 = vunpack.c.l.b16 %v210
      %v418 = vunpack.c.l.b16 %v211
      %v419 = vunpack.c.l.b16 %v212
      %v420 = vunpack.c.l.b16 %v213
      %v421 = vunpack.c.l.b16 %v214
      %v422 = vunpack.c.l.b16 %v215
      %v423 = vunpack.c.l.b16 %v216
      %v424 = vunpack.c.l.b16 %v217
      %v425 = vunpack.c.l.b16 %v218
      %v426 = vunpack.c.l.b16 %v219
      %v427 = vunpack.c.l.b16 %v220
      %v428 = vunpack.c.l.b16 %v221
      %v429 = vunpack.c.l.b16 %v222
      %v430 = vunpack.c.l.b16 %v223
      %v431 = vunpack.c.l.b16 %v224
      %v432 = vunpack.c.l.b16 %v225
      %v433 = vunpack.c.l.b16 %v226
      %v434 = vunpack.c.l.b16 %v227
      %v435 = vunpack.c.l.b16 %v228
      %v436 = vunpack.c.l.b16 %v229
      %v437 = vunpack.c.l.b16 %v230
      %v438 = vunpack.c.l.b16 %v231
      %v439 = vunpack.c.l.b16 %v232
      %v440 = vunpack.c.l.b16 %v233
      %v441 = vunpack.c.l.b16 %v234
      %v442 = vunpack.c.l.b16 %v235
      %v443 = vunpack.c.l.b16 %v236
      %v444 = vunpack.c.l.b16 %v237
      %v445 = vunpack.c.l.b16 %v238
      %v446 = vunpack.c.l.b16 %v239
      %v447 = vunpack.c.l.b16 %v240
      %v448 = vunpack.c.l.b16 %v241
      %v449 = vunpack.c.l.b16 %v242
      %v450 = vunpack.c.l.b16 %v243
      %v451 = vunpack.c.l.b16 %v244
      %v452 = vunpack.c.l.b16 %v245
      %v453 = vunpack.c.l.b16 %v246
      %v454 = vunpack.c.l.b16 %v247
      %v455 = vunpack.c.l.b16 %v248
      %v456 = vunpack.c.l.b16 %v249
      %v457 = vunpack.c.l.b16 %v250
      %v458 = vunpack.c.l.b16 %v251
      %v459 = vunpack.c.l.b16 %v252
      %v460 = vunpack.c.l.b16 %v253
      %v461 = vunpack.c.l.b16 %v254
      %v462 = vunpack.c.l.b16 %v255
      %v463 = vunpack.c.l.b16 %v256
      %v464 = vunpack.c.l.b16 %v257
      %v465 = vunpack.c.l.b16 %v258
      %v466 = vunpack.c.l.b16 %v259
      %v467 = vunpack.c.l.b16 %v260
      %v468 = vunpack.c.l.b16 %v261
      %v469 = vunpack.c.l.b16 %v262
      %v470 = vunpack.c.l.b16 %v263
      %v471 = vunpack.c.l.b16 %v264
      %v472 = vpack.c.b16 %v398, %v397
      %v473 = vpack.c.b16 %v400, %v399
      %v474 = vpack.c.b16 %v402, %v401
      %v475 = vpack.c.b16 %v404, %v403
      %v476 = vpack.c.b16 %v406, %v405
      %v477 = vpack.c.b16 %v408, %v407
      %v478 = vpack.c.b16 %v410, %v409
      %v479 = vpack.c.b16 %v412, %v411
      %v480 = vpack.c.b16 %v414, %v413
      %v481 = vpack.c.b16 %v416, %v415
      %v482 = vpack.c.b16 %v418, %v417
      %v483 = vpack.c.b16 %v420, %v419
      %v484 = vpack.c.b16 %v422, %v421
      %v485 = vpack.c.b16 %v424, %v423
      %v486 = vpack.c.b16 %v426, %v425
      %v487 = vpack.c.b16 %v428, %v427
      %v488 = vpack.c.b16 %v430, %v429
      %v489 = vpack.c.b16 %v432, %v431
      %v490 = vpack.c.b16 %v434, %v433
      %v491 = vpack.c.b16 %v436, %v435
      %v492 = vpack.c.b16 %v438, %v437
      %v493 = vpack.c.b16 %v440, %v439
      %v494 = vpack.c.b16 %v442, %v441
      %v495 = vpack.c.b16 %v444, %v443
      %v496 = vpack.c.b16 %v446, %v445
      %v497 = vpack.c.b16 %v448, %v447
      %v498 = vpack.c.b16 %v450, %v449
      %v499 = vpack.c.b16 %v452, %v451
      %v500 = vpack.c.b16 %v454, %v453
      %v501 = vpack.c.b16 %v456, %v455
      %v502 = vpack.c.b16 %v458, %v457
      %v503 = vpack.c.b16 %v460, %v459
      %v504 = vpack.c.b16 %v462, %v461
      %v505 = vpack.c.b16 %v464, %v463
      %v506 = vpack.c.b16 %v466, %v465
      %v507 = vpack.c.b16 %v468, %v467
      %v508 = vpack.c.b16 %v470, %v469
      %v509 = vpack.c.b16 %v471, %v471
      %vm547 = vcmask 719872
      %v549 = vsel %vm547, %v308, 0
      %v552 = vsel %vm547, %v313, 0
      %vm554 = vcmask 1043456
      %v556 = vsel %vm554, %v509, 0
      %558 = vmatprep.subr.bf16.mxu0 0
      %559 = vmatpush1.bf16.msra.mxu0 %v479
      %560 = vmatprep.subr.bf16.mxu0 0
      %561 = vmatpush1.bf16.msra.mxu0 %v478
      %562 = vmatprep.subr.bf16.mxu0 0
      %563 = vmatpush1.bf16.msra.mxu0 %v477
      %564 = vmatprep.subr.bf16.mxu0 0
      %565 = vmatpush1.bf16.msra.mxu0 %v476
      %566 = vmatprep.subr.bf16.mxu0 0
      %567 = vmatpush1.bf16.msra.mxu0 %v475
      %568 = vmatprep.subr.bf16.mxu0 0
      %569 = vmatpush1.bf16.msra.mxu0 %v474
      %570 = vmatprep.subr.bf16.mxu0 0
      %571 = vmatpush1.bf16.msra.mxu0 %v473
      %572 = vmatprep.subr.bf16.mxu0 0
      %573 = vmatpush1.bf16.msra.mxu0 %v472
      %574 = vmatprep.subr.bf16.mxu0 0
      %575 = vmatpush2.bf16.msra.mxu0 %v487
      %576 = vmatprep.subr.bf16.mxu0 0
      %577 = vmatpush2.bf16.msra.mxu0 %v486
      %578 = vmatprep.subr.bf16.mxu0 0
      %579 = vmatpush2.bf16.msra.mxu0 %v485
      %580 = vmatprep.subr.bf16.mxu0 0
      %581 = vmatpush2.bf16.msra.mxu0 %v484
      %582 = vmatprep.subr.bf16.mxu0 0
      %583 = vmatpush2.bf16.msra.mxu0 %v483
      %584 = vmatprep.subr.bf16.mxu0 0
      %585 = vmatpush2.bf16.msra.mxu0 %v482
      %586 = vmatprep.subr.bf16.mxu0 0
      %587 = vmatpush2.bf16.msra.mxu0 %v481
      %588 = vmatprep.subr.bf16.mxu0 0
      %589 = vmatpush2.bf16.msra.mxu0 %v480
      %590 = vmatprep.mubr.bf16.mxu0 %v305
      %591 = vmatmul.mubr.bf16.gmra.mxu0 %v304
      %v592 = vpop.f32.mrf.mxu0
      %v593 = vadd.f32 %v270, %v592
      %v594 = vpop.f32.mrf.mxu0
      %v595 = vpop.f32.mrf.mxu0
      %v596 = vadd.f32 %v270, %v595
      %v597 = vpop.f32.mrf.mxu0
      %598 = vmatprep.mubr.bf16.mxu0 %v310
      %599 = vmatmul.mubr.bf16.gmra.mxu0 %v309
      %v600 = vpop.f32.mrf.mxu0
      %v601 = vadd.f32 %v270, %v600
      %v602 = vpop.f32.mrf.mxu0
      %v603 = vpop.f32.mrf.mxu0
      %v604 = vadd.f32 %v270, %v603
      %v605 = vpop.f32.mrf.mxu0
      %606 = vdwg.mxu0
      %607 = vmatprep.subr.bf16.mxu0 0
      %608 = vmatpush1.bf16.msra.mxu0 %v495
      %609 = vmatprep.subr.bf16.mxu0 0
      %610 = vmatpush1.bf16.msra.mxu0 %v494
      %611 = vmatprep.subr.bf16.mxu0 0
      %612 = vmatpush1.bf16.msra.mxu0 %v493
      %613 = vmatprep.subr.bf16.mxu0 0
      %614 = vmatpush1.bf16.msra.mxu0 %v492
      %615 = vmatprep.subr.bf16.mxu0 0
      %616 = vmatpush1.bf16.msra.mxu0 %v491
      %617 = vmatprep.subr.bf16.mxu0 0
      %618 = vmatpush1.bf16.msra.mxu0 %v490
      %619 = vmatprep.subr.bf16.mxu0 0
      %620 = vmatpush1.bf16.msra.mxu0 %v489
      %621 = vmatprep.subr.bf16.mxu0 0
      %622 = vmatpush1.bf16.msra.mxu0 %v488
      %623 = vmatprep.subr.bf16.mxu0 0
      %624 = vmatpush2.bf16.msra.mxu0 %v503
      %625 = vmatprep.subr.bf16.mxu0 0
      %626 = vmatpush2.bf16.msra.mxu0 %v502
      %627 = vmatprep.subr.bf16.mxu0 0
      %628 = vmatpush2.bf16.msra.mxu0 %v501
      %629 = vmatprep.subr.bf16.mxu0 0
      %630 = vmatpush2.bf16.msra.mxu0 %v500
      %631 = vmatprep.subr.bf16.mxu0 0
      %632 = vmatpush2.bf16.msra.mxu0 %v499
      %633 = vmatprep.subr.bf16.mxu0 0
      %634 = vmatpush2.bf16.msra.mxu0 %v498
      %635 = vmatprep.subr.bf16.mxu0 0
      %636 = vmatpush2.bf16.msra.mxu0 %v497
      %637 = vmatprep.subr.bf16.mxu0 0
      %638 = vmatpush2.bf16.msra.mxu0 %v496
      %639 = vmatprep.mubr.bf16.mxu0 %v307
      %640 = vmatmul.mubr.bf16.gmra.mxu0 %v306
      %v641 = vpop.f32.mrf.mxu0
      %v642 = vadd.f32 %v593, %v641
      %v643 = vpop.f32.mrf.mxu0
      %v644 = vpop.f32.mrf.mxu0
      %v645 = vadd.f32 %v596, %v644
      %v646 = vpop.f32.mrf.mxu0
      %647 = vmatprep.mubr.bf16.mxu0 %v312
      %648 = vmatmul.mubr.bf16.gmra.mxu0 %v311
      %v649 = vpop.f32.mrf.mxu0
      %v650 = vadd.f32 %v601, %v649
      %v651 = vpop.f32.mrf.mxu0
      %v652 = vpop.f32.mrf.mxu0
      %v653 = vadd.f32 %v604, %v652
      %v654 = vpop.f32.mrf.mxu0
      %655 = vdwg.mxu0
      %656 = vmatprep.subr.bf16.mxu0 0
      %657 = vmatpush1.bf16.msra.mxu0 0
      %658 = vmatprep.subr.bf16.mxu0 0
      %659 = vmatpush1.bf16.msra.mxu0 0
      %660 = vmatprep.subr.bf16.mxu0 0
      %661 = vmatpush1.bf16.msra.mxu0 %v556
      %662 = vmatprep.subr.bf16.mxu0 0
      %663 = vmatpush1.bf16.msra.mxu0 %v508
      %664 = vmatprep.subr.bf16.mxu0 0
      %665 = vmatpush1.bf16.msra.mxu0 %v507
      %666 = vmatprep.subr.bf16.mxu0 0
      %667 = vmatpush1.bf16.msra.mxu0 %v506
      %668 = vmatprep.subr.bf16.mxu0 0
      %669 = vmatpush1.bf16.msra.mxu0 %v505
      %670 = vmatprep.subr.bf16.mxu0 0
      %671 = vmatpush1.bf16.msra.mxu0 %v504
      %672 = vmatprep.subr.bf16.mxu0 0
      %673 = vmatpush2.bf16.msra.mxu0 0
      %674 = vmatprep.subr.bf16.mxu0 0
      %675 = vmatpush2.bf16.msra.mxu0 0
      %676 = vmatprep.subr.bf16.mxu0 0
      %677 = vmatpush2.bf16.msra.mxu0 0
      %678 = vmatprep.subr.bf16.mxu0 0
      %679 = vmatpush2.bf16.msra.mxu0 0
      %680 = vmatprep.subr.bf16.mxu0 0
      %681 = vmatpush2.bf16.msra.mxu0 0
      %682 = vmatprep.subr.bf16.mxu0 0
      %683 = vmatpush2.bf16.msra.mxu0 0
      %684 = vmatprep.subr.bf16.mxu0 0
      %685 = vmatpush2.bf16.msra.mxu0 0
      %686 = vmatprep.subr.bf16.mxu0 0
      %687 = vmatpush2.bf16.msra.mxu0 0
      %688 = vmatprep.mubr.bf16.mxu0 0
      %689 = vmatmul.mubr.bf16.gmra.mxu0 %v549
      %v690 = vpop.f32.mrf.mxu0
      %v691 = vadd.f32 %v642, %v690
      %v692 = vpop.f32.mrf.mxu0
      %v693 = vpop.f32.mrf.mxu0
      %v694 = vadd.f32 %v645, %v693
      %v695 = vpop.f32.mrf.mxu0
      %696 = vmatprep.mubr.bf16.mxu0 0
      %697 = vmatmul.mubr.bf16.gmra.mxu0 %v552
      %v698 = vpop.f32.mrf.mxu0
      %v699 = vadd.f32 %v650, %v698
      %v700 = vpop.f32.mrf.mxu0
      %v701 = vpop.f32.mrf.mxu0
      %v702 = vadd.f32 %v653, %v701
      %v703 = vpop.f32.mrf.mxu0
      %704 = vdwg.mxu0
      %v705 = vxor.u32 %v691, 2147483648
      %v706 = vxor.u32 %v694, 2147483648
      %v707 = vxor.u32 %v699, 2147483648
      %v708 = vxor.u32 %v702, 2147483648
      %v709 = vmul.f32 %v705, 1.442695
      %v710 = vpow.pop %v709
      %v711 = vmul.f32 %v706, 1.442695
      %v712 = vpow.pop %v711
      %v713 = vmul.f32 %v707, 1.442695
      %v714 = vpow.pop %v713
      %v715 = vmul.f32 %v708, 1.442695
      %v716 = vpow.pop %v715
      %v717 = vadd.f32 %v710, 1.0
      %v718 = vadd.f32 %v712, 1.0
      %v719 = vadd.f32 %v714, 1.0
      %v720 = vadd.f32 %v716, 1.0
      %v721 = vrcp.pop %v717
      %v722 = vmul.f32 1.0, %v721
      %v723 = vrcp.pop %v718
      %v724 = vmul.f32 1.0, %v723
      %v725 = vrcp.pop %v719
      %v726 = vmul.f32 1.0, %v725
      %v727 = vrcp.pop %v720
      %v728 = vmul.f32 1.0, %v727
      %729 = vrot.lane.b32.xlu0 %v722, 32
      %v730 = vpop.permute.xlu0 %729
      %731 = vrot.lane.b32.xlu0 %v724, 32
      %v732 = vpop.permute.xlu0 %731
      %733 = vrot.lane.b32.xlu0 %v726, 32
      %v734 = vpop.permute.xlu0 %733
      %735 = vrot.lane.b32.xlu0 %v728, 32
      %v736 = vpop.permute.xlu0 %735
      %v737 = vadd.f32 %v722, %v730
      %v738 = vadd.f32 %v724, %v732
      %v739 = vadd.f32 %v726, %v734
      %v740 = vadd.f32 %v728, %v736
      %741 = vrot.lane.b32.xlu0 %v722, 64
      %v742 = vpop.permute.xlu0 %741
      %743 = vrot.lane.b32.xlu0 %v724, 64
      %v744 = vpop.permute.xlu0 %743
      %745 = vrot.lane.b32.xlu0 %v726, 64
      %v746 = vpop.permute.xlu0 %745
      %747 = vrot.lane.b32.xlu0 %v728, 64
      %v748 = vpop.permute.xlu0 %747
      %v749 = vadd.f32 %v737, %v742
      %v750 = vadd.f32 %v738, %v744
      %v751 = vadd.f32 %v739, %v746
      %v752 = vadd.f32 %v740, %v748
      %753 = vrot.lane.b32.xlu0 %v722, 96
      %v754 = vpop.permute.xlu0 %753
      %755 = vrot.lane.b32.xlu0 %v724, 96
      %v756 = vpop.permute.xlu0 %755
      %757 = vrot.lane.b32.xlu0 %v726, 96
      %v758 = vpop.permute.xlu0 %757
      %759 = vrot.lane.b32.xlu0 %v728, 96
      %v760 = vpop.permute.xlu0 %759
      %v761 = vadd.f32 %v749, %v754
      %v762 = vadd.f32 %v750, %v756
      %v763 = vadd.f32 %v751, %v758
      %v764 = vadd.f32 %v752, %v760
      %v765 = vmul.f32 %v761, 0.25
      %v766 = vmul.f32 %v762, 0.25
      %v767 = vmul.f32 %v763, 0.25
      %v768 = vmul.f32 %v764, 0.25
      %v769 = vpack.c.bf16 %v766, %v765
      %v770 = vpack.c.bf16 %v768, %v767
      %v773 = vunpack.c.l.b16 %v769
      %v774 = vunpack.c.h.b16 %v769
      %v775 = vunpack.c.l.b16 %v770
      %v776 = vunpack.c.h.b16 %v770
      %v777 = vpack.c.b16 %v773, %v773
      %v778 = vpack.c.b16 %v774, %v774
      %v779 = vpack.c.b16 %v775, %v775
      %v780 = vpack.c.b16 %v776, %v776
      %785 = vst [vmem:[%s175] sm:$0xf] %v777
      %786 = vst [vmem:[%s175 + $0x4] sm:$0xf] %v778
      %787 = vst [vmem:[%s175 + $0x8] sm:$0xf] %v779
      %788 = vst [vmem:[%s175 + $0xc] sm:$0xf] %v780
      %s789 = smul.u32 4, %s14
      %p790 = scmp.lt.s32.totalorder %s789, 7
      %s791 = scalar_select %p790, %s789, 7
      %s792 = smul.addr %s791, 4
      %s793 = scalar_lea.vmem %s3, %s792
      // Predicated region
      $region33: #{lenet_forward.4} parent=31 // pred_check
        %p794 = pneg %p100
      $region34: #{lenet_forward.4} parent=31 // pred_check_branch
        %796 = sbr.rel (%p794) target = $region36
      $region35: #{lenet_forward.4} parent=31 // pred_region
        %s797 = smul.u32 4, %s14
      $region36: #{lenet_forward.4} parent=31 // pred_fallthru
        _
    $region32: #{lenet_forward.4} parent=5 // pred_fallthru
      _
    %p798 = scmp.le.s32.totalorder 2, %s9
    // Predicated region
    $region37: #{lenet_forward.4} parent=5 // pred_check
      %p799 = pneg %p798
    $region38: #{lenet_forward.4} parent=5 // pred_check_branch
      %801 = sbr.rel (%p799) target = $region40
    $region39: #{lenet_forward.4} parent=5 // pred_region
      %s802 = ssub.s32 %s9, 2
      // Predicated region
      $region41: #{lenet_forward.4} parent=39 // pred_check
        %p803 = pneg %p106
      $region42: #{lenet_forward.4} parent=39 // pred_check_branch
        %805 = sbr.rel (%p803) target = $region44
      $region43: #{lenet_forward.4} parent=39 // pred_region
        %s806 = smul.u32 4, %s15
        %p807 = scmp.lt.s32.totalorder %s806, 7
        %s808 = scalar_select %p807, %s806, 7
        %s809 = smul.addr %s808, 4
        %s810 = scalar_lea.vmem %s3, %s809
      $region44: #{lenet_forward.4} parent=39 // pred_fallthru
        _
    $region40: #{lenet_forward.4} parent=5 // pred_fallthru
      _
  $region6: #{lenet_forward.4} parent=0 // loop_footer
    %s13 = sadd.s32 1, %s9
  $region7: #{lenet_forward.4} parent=0 // loop_footer_branch
    %8 = sbr.rel target = $region3
  $region8: #{lenet_forward.4} parent=0 // loop_exit
    _

// kernel: lenet_forward.5
$region0: #{lenet_forward.5}
  #allocation0 [shape = 'u32[]', space=smem, size = 0x4, offset = 0x4, fixed_abs, tag = 'smem constant byte address 0x4 - core index']
  #allocation1 [shape = 'u32[144,128]{1,0:T(1,128)}', space=vmem, size = 0x12000, scoped, tag = 'internal scratch']
  %s0 = inlined_call_operand.vmem [shape: bf16[16,400], index: 0, kind: input, shape index: {}]
  %s1 = inlined_call_operand.vmem [shape: bf16[400,128], index: 1, kind: input, shape index: {}]
  %s2 = inlined_call_operand.vmem [shape: f32[1,128], index: 2, kind: input, shape index: {}]
  %s3 = inlined_call_operand.vmem [shape: bf16[128,128], index: 3, kind: input, shape index: {}]
  %s4 = inlined_call_operand.vmem [shape: f32[1,128], index: 4, kind: input, shape index: {}]
  %s5 = inlined_call_operand.vmem [shape: bf16[128,128], index: 5, kind: input, shape index: {}]
  %s6 = inlined_call_operand.vmem [shape: f32[1,128], index: 6, kind: input, shape index: {}]
  %s7 = inlined_call_operand.vmem [shape: f32[16,128], index: 7, kind: output, shape index: {}]
  %s8 = sld [smem:[#allocation0]]
  $region38: #{lenet_forward.5} parent=0
    _
  %s10 = ssub.s32 1, %s8
  %s11 = scalar_select 0, %s10, %s8
  // Predicated region
  $region2: #{lenet_forward.5} parent=0 // pred_check
    _
  $region3: #{lenet_forward.5} parent=0 // pred_check_branch
    %13 = sbr.rel (0) target = $region5
  $region4: #{lenet_forward.5} parent=0 // pred_region
    _
  $region5: #{lenet_forward.5} parent=0 // pred_fallthru
    _
  // Predicated region
  $region6: #{lenet_forward.5} parent=0 // pred_check
    _
  $region7: #{lenet_forward.5} parent=0 // pred_check_branch
    %15 = sbr.rel (0) target = $region9
  $region8: #{lenet_forward.5} parent=0 // pred_region
    _
  $region9: #{lenet_forward.5} parent=0 // pred_fallthru
    _
  // Predicated region
  $region10: #{lenet_forward.5} parent=0 // pred_check
    _
  $region11: #{lenet_forward.5} parent=0 // pred_check_branch
    %17 = sbr.rel (0) target = $region13
  $region12: #{lenet_forward.5} parent=0 // pred_region
    _
  $region13: #{lenet_forward.5} parent=0 // pred_fallthru
    _
  // Predicated region
  $region14: #{lenet_forward.5} parent=0 // pred_check
    _
  $region15: #{lenet_forward.5} parent=0 // pred_check_branch
    %19 = sbr.rel (0) target = $region17
  $region16: #{lenet_forward.5} parent=0 // pred_region
    _
  $region17: #{lenet_forward.5} parent=0 // pred_fallthru
    _
  // Predicated region
  $region18: #{lenet_forward.5} parent=0 // pred_check
    _
  $region19: #{lenet_forward.5} parent=0 // pred_check_branch
    %21 = sbr.rel (0) target = $region21
  $region20: #{lenet_forward.5} parent=0 // pred_region
    _
  $region21: #{lenet_forward.5} parent=0 // pred_fallthru
    _
  // Predicated region
  $region22: #{lenet_forward.5} parent=0 // pred_check
    _
  $region23: #{lenet_forward.5} parent=0 // pred_check_branch
    %23 = sbr.rel (0) target = $region25
  $region24: #{lenet_forward.5} parent=0 // pred_region
    _
  $region25: #{lenet_forward.5} parent=0 // pred_fallthru
    _
  // Predicated region
  $region26: #{lenet_forward.5} parent=0 // pred_check
    _
  $region27: #{lenet_forward.5} parent=0 // pred_check_branch
    %25 = sbr.rel (0) target = $region29
  $region28: #{lenet_forward.5} parent=0 // pred_region
    _
  $region29: #{lenet_forward.5} parent=0 // pred_fallthru
    _
  %v27 = vld [vmem:[%s0] sm:$0xff]
  %v28 = vld [vmem:[%s0 + $0x8] sm:$0xff]
  %v29 = vld [vmem:[%s0 + $0x10] sm:$0xff]
  %v30 = vld [vmem:[%s0 + $0x18] sm:$0xff]
  %v31 = vld [vmem:[%s1] sm:$0xf]
  %v32 = vld [vmem:[%s1 + $0x4] sm:$0xf]
  %v33 = vld [vmem:[%s1 + $0x8] sm:$0xf]
  %v34 = vld [vmem:[%s1 + $0xc] sm:$0xf]
  %v35 = vld [vmem:[%s1 + $0x10] sm:$0xf]
  %v36 = vld [vmem:[%s1 + $0x14] sm:$0xf]
  %v37 = vld [vmem:[%s1 + $0x18] sm:$0xf]
  %v38 = vld [vmem:[%s1 + $0x1c] sm:$0xf]
  %v39 = vld [vmem:[%s1 + $0x20] sm:$0xf]
  %v40 = vld [vmem:[%s1 + $0x24] sm:$0xf]
  %v41 = vld [vmem:[%s1 + $0x28] sm:$0xf]
  %v42 = vld [vmem:[%s1 + $0x2c] sm:$0xf]
  %v43 = vld [vmem:[%s1 + $0x30] sm:$0xf]
  %v44 = vld [vmem:[%s1 + $0x34] sm:$0xf]
  %v45 = vld [vmem:[%s1 + $0x38] sm:$0xf]
  %v46 = vld [vmem:[%s1 + $0x3c] sm:$0xf]
  %v47 = vld [vmem:[%s1 + $0x40] sm:$0xf]
  %v48 = vld [vmem:[%s1 + $0x44] sm:$0xf]
  %v49 = vld [vmem:[%s1 + $0x48] sm:$0xf]
  %v50 = vld [vmem:[%s1 + $0x4c] sm:$0xf]
  %v51 = vld [vmem:[%s1 + $0x50] sm:$0xf]
  %v52 = vld [vmem:[%s1 + $0x54] sm:$0xf]
  %v53 = vld [vmem:[%s1 + $0x58] sm:$0xf]
  %v54 = vld [vmem:[%s1 + $0x5c] sm:$0xf]
  %v55 = vld [vmem:[%s1 + $0x60] sm:$0xf]
  %v56 = vld [vmem:[%s1 + $0x64] sm:$0xf]
  %v57 = vld [vmem:[%s1 + $0x68] sm:$0xf]
  %v58 = vld [vmem:[%s1 + $0x6c] sm:$0xf]
  %v59 = vld [vmem:[%s1 + $0x70] sm:$0xf]
  %v60 = vld [vmem:[%s1 + $0x74] sm:$0xf]
  %v61 = vld [vmem:[%s1 + $0x78] sm:$0xf]
  %v62 = vld [vmem:[%s1 + $0x7c] sm:$0xf]
  %v63 = vld [vmem:[%s1 + $0x80] sm:$0xf]
  %v64 = vld [vmem:[%s1 + $0x84] sm:$0xf]
  %v65 = vld [vmem:[%s1 + $0x88] sm:$0xf]
  %v66 = vld [vmem:[%s1 + $0x8c] sm:$0xf]
  %v67 = vld [vmem:[%s1 + $0x90] sm:$0xf]
  %v68 = vld [vmem:[%s1 + $0x94] sm:$0xf]
  %v69 = vld [vmem:[%s1 + $0x98] sm:$0xf]
  %v70 = vld [vmem:[%s1 + $0x9c] sm:$0xf]
  %v71 = vld [vmem:[%s1 + $0xa0] sm:$0xf]
  %v72 = vld [vmem:[%s1 + $0xa4] sm:$0xf]
  %v73 = vld [vmem:[%s1 + $0xa8] sm:$0xf]
  %v74 = vld [vmem:[%s1 + $0xac] sm:$0xf]
  %v75 = vld [vmem:[%s1 + $0xb0] sm:$0xf]
  %v76 = vld [vmem:[%s1 + $0xb4] sm:$0xf]
  %v77 = vld [vmem:[%s1 + $0xb8] sm:$0xf]
  %v78 = vld [vmem:[%s1 + $0xbc] sm:$0xf]
  %v79 = vld [vmem:[%s1 + $0xc0] sm:$0xf]
  %v80 = vld [vmem:[%s1 + $0xc4] sm:$0xf]
  %v81 = vld [vmem:[%s2] sm:$0x1]
  %v83 = vlaneseq
  %v84 = vshrl.u32 %v83, 7
  %v85 = vsub.s32 0, %v84
  %v86 = vrot.slane %v81, %v85
  %v92 = vunpack.c.l.b16 %v27
  %v93 = vunpack.c.h.b16 %v27
  %v94 = vunpack.c.l.b16 %v28
  %v95 = vunpack.c.h.b16 %v28
  %v96 = vunpack.c.l.b16 %v29
  %v97 = vunpack.c.h.b16 %v29
  %v98 = vunpack.c.l.b16 %v30
  %v99 = vunpack.c.h.b16 %v30
  %v100 = vpack.c.b16 %v96, %v92
  %v101 = vpack.c.b16 %v97, %v93
  %v102 = vpack.c.b16 %v98, %v94
  %v103 = vpack.c.b16 %v99, %v95
  %v157 = vunpack.c.l.b16 %v31
  %v158 = vunpack.c.l.b16 %v32
  %v159 = vunpack.c.l.b16 %v33
  %v160 = vunpack.c.l.b16 %v34
  %v161 = vunpack.c.l.b16 %v35
  %v162 = vunpack.c.l.b16 %v36
  %v163 = vunpack.c.l.b16 %v37
  %v164 = vunpack.c.l.b16 %v38
  %v165 = vunpack.c.l.b16 %v39
  %v166 = vunpack.c.l.b16 %v40
  %v167 = vunpack.c.l.b16 %v41
  %v168 = vunpack.c.l.b16 %v42
  %v169 = vunpack.c.l.b16 %v43
  %v170 = vunpack.c.l.b16 %v44
  %v171 = vunpack.c.l.b16 %v45
  %v172 = vunpack.c.l.b16 %v46
  %v173 = vunpack.c.l.b16 %v47
  %v174 = vunpack.c.l.b16 %v48
  %v175 = vunpack.c.l.b16 %v49
  %v176 = vunpack.c.l.b16 %v50
  %v177 = vunpack.c.l.b16 %v51
  %v178 = vunpack.c.l.b16 %v52
  %v179 = vunpack.c.l.b16 %v53
  %v180 = vunpack.c.l.b16 %v54
  %v181 = vunpack.c.l.b16 %v55
  %v182 = vunpack.c.l.b16 %v56
  %v183 = vunpack.c.l.b16 %v57
  %v184 = vunpack.c.l.b16 %v58
  %v185 = vunpack.c.l.b16 %v59
  %v186 = vunpack.c.l.b16 %v60
  %v187 = vunpack.c.l.b16 %v61
  %v188 = vunpack.c.l.b16 %v62
  %v189 = vunpack.c.l.b16 %v63
  %v190 = vunpack.c.l.b16 %v64
  %v191 = vunpack.c.l.b16 %v65
  %v192 = vunpack.c.l.b16 %v66
  %v193 = vunpack.c.l.b16 %v67
  %v194 = vunpack.c.l.b16 %v68
  %v195 = vunpack.c.l.b16 %v69
  %v196 = vunpack.c.l.b16 %v70
  %v197 = vunpack.c.l.b16 %v71
  %v198 = vunpack.c.l.b16 %v72
  %v199 = vunpack.c.l.b16 %v73
  %v200 = vunpack.c.l.b16 %v74
  %v201 = vunpack.c.l.b16 %v75
  %v202 = vunpack.c.l.b16 %v76
  %v203 = vunpack.c.l.b16 %v77
  %v204 = vunpack.c.l.b16 %v78
  %v205 = vunpack.c.l.b16 %v79
  %v206 = vunpack.c.l.b16 %v80
  %v207 = vpack.c.b16 %v158, %v157
  %v208 = vpack.c.b16 %v160, %v159
  %v209 = vpack.c.b16 %v162, %v161
  %v210 = vpack.c.b16 %v164, %v163
  %v211 = vpack.c.b16 %v166, %v165
  %v212 = vpack.c.b16 %v168, %v167
  %v213 = vpack.c.b16 %v170, %v169
  %v214 = vpack.c.b16 %v172, %v171
  %v215 = vpack.c.b16 %v174, %v173
  %v216 = vpack.c.b16 %v176, %v175
  %v217 = vpack.c.b16 %v178, %v177
  %v218 = vpack.c.b16 %v180, %v179
  %v219 = vpack.c.b16 %v182, %v181
  %v220 = vpack.c.b16 %v184, %v183
  %v221 = vpack.c.b16 %v186, %v185
  %v222 = vpack.c.b16 %v188, %v187
  %v223 = vpack.c.b16 %v190, %v189
  %v224 = vpack.c.b16 %v192, %v191
  %v225 = vpack.c.b16 %v194, %v193
  %v226 = vpack.c.b16 %v196, %v195
  %v227 = vpack.c.b16 %v198, %v197
  %v228 = vpack.c.b16 %v200, %v199
  %v229 = vpack.c.b16 %v202, %v201
  %v230 = vpack.c.b16 %v204, %v203
  %v231 = vpack.c.b16 %v206, %v205
  %vm257 = vcmask 130048
  %v259 = vsel %vm257, %v103, 0
  %261 = vmatprep.subr.bf16.mxu0 0
  %262 = vmatpush1.bf16.msra.mxu0 %v214
  %263 = vmatprep.subr.bf16.mxu0 0
  %264 = vmatpush1.bf16.msra.mxu0 %v213
  %265 = vmatprep.subr.bf16.mxu0 0
  %266 = vmatpush1.bf16.msra.mxu0 %v212
  %267 = vmatprep.subr.bf16.mxu0 0
  %268 = vmatpush1.bf16.msra.mxu0 %v211
  %269 = vmatprep.subr.bf16.mxu0 0
  %270 = vmatpush1.bf16.msra.mxu0 %v210
  %271 = vmatprep.subr.bf16.mxu0 0
  %272 = vmatpush1.bf16.msra.mxu0 %v209
  %273 = vmatprep.subr.bf16.mxu0 0
  %274 = vmatpush1.bf16.msra.mxu0 %v208
  %275 = vmatprep.subr.bf16.mxu0 0
  %276 = vmatpush1.bf16.msra.mxu0 %v207
  %277 = vmatprep.subr.bf16.mxu0 0
  %278 = vmatpush2.bf16.msra.mxu0 %v222
  %279 = vmatprep.subr.bf16.mxu0 0
  %280 = vmatpush2.bf16.msra.mxu0 %v221
  %281 = vmatprep.subr.bf16.mxu0 0
  %282 = vmatpush2.bf16.msra.mxu0 %v220
  %283 = vmatprep.subr.bf16.mxu0 0
  %284 = vmatpush2.bf16.msra.mxu0 %v219
  %285 = vmatprep.subr.bf16.mxu0 0
  %286 = vmatpush2.bf16.msra.mxu0 %v218
  %287 = vmatprep.subr.bf16.mxu0 0
  %288 = vmatpush2.bf16.msra.mxu0 %v217
  %289 = vmatprep.subr.bf16.mxu0 0
  %290 = vmatpush2.bf16.msra.mxu0 %v216
  %291 = vmatprep.subr.bf16.mxu0 0
  %292 = vmatpush2.bf16.msra.mxu0 %v215
  %293 = vmatprep.mubr.bf16.mxu0 %v101
  %294 = vmatmul.mubr.bf16.gmra.mxu0 %v100
  %v295 = vpop.f32.mrf.mxu0
  %v296 = vadd.f32 %v86, %v295
  %v297 = vpop.f32.mrf.mxu0
  %v298 = vpop.f32.mrf.mxu0
  %v299 = vadd.f32 %v86, %v298
  %v300 = vpop.f32.mrf.mxu0
  %301 = vdwg.mxu0
  %302 = vmatprep.subr.bf16.mxu0 0
  %303 = vmatpush1.bf16.msra.mxu0 %v230
  %304 = vmatprep.subr.bf16.mxu0 0
  %305 = vmatpush1.bf16.msra.mxu0 %v229
  %306 = vmatprep.subr.bf16.mxu0 0
  %307 = vmatpush1.bf16.msra.mxu0 %v228
  %308 = vmatprep.subr.bf16.mxu0 0
  %309 = vmatpush1.bf16.msra.mxu0 %v227
  %310 = vmatprep.subr.bf16.mxu0 0
  %311 = vmatpush1.bf16.msra.mxu0 %v226
  %312 = vmatprep.subr.bf16.mxu0 0
  %313 = vmatpush1.bf16.msra.mxu0 %v225
  %314 = vmatprep.subr.bf16.mxu0 0
  %315 = vmatpush1.bf16.msra.mxu0 %v224
  %316 = vmatprep.subr.bf16.mxu0 0
  %317 = vmatpush1.bf16.msra.mxu0 %v223
  %318 = vmatprep.subr.bf16.mxu0 0
  %319 = vmatpush2.bf16.msra.mxu0 0
  %320 = vmatprep.subr.bf16.mxu0 0
  %321 = vmatpush2.bf16.msra.mxu0 0
  %322 = vmatprep.subr.bf16.mxu0 0
  %323 = vmatpush2.bf16.msra.mxu0 0
  %324 = vmatprep.subr.bf16.mxu0 0
  %325 = vmatpush2.bf16.msra.mxu0 0
  %326 = vmatprep.subr.bf16.mxu0 0
  %327 = vmatpush2.bf16.msra.mxu0 0
  %328 = vmatprep.subr.bf16.mxu0 0
  %329 = vmatpush2.bf16.msra.mxu0 0
  %330 = vmatprep.subr.bf16.mxu0 0
  %331 = vmatpush2.bf16.msra.mxu0 0
  %332 = vmatprep.subr.bf16.mxu0 0
  %333 = vmatpush2.bf16.msra.mxu0 %v231
  %334 = vmatprep.mubr.bf16.mxu0 %v259
  %335 = vmatmul.mubr.bf16.gmra.mxu0 %v102
  %v336 = vpop.f32.mrf.mxu0
  %v337 = vadd.f32 %v296, %v336
  %v338 = vpop.f32.mrf.mxu0
  %v339 = vpop.f32.mrf.mxu0
  %v340 = vadd.f32 %v299, %v339
  %v341 = vpop.f32.mrf.mxu0
  %342 = vdwg.mxu0
  %v343 = vxor.u32 %v337, 2147483648
  %v344 = vxor.u32 %v340, 2147483648
  %v345 = vmul.f32 %v343, 1.442695
  %v346 = vpow.pop %v345
  %v347 = vmul.f32 %v344, 1.442695
  %v348 = vpow.pop %v347
  %v349 = vadd.f32 %v346, 1.0
  %v350 = vadd.f32 %v348, 1.0
  %v351 = vrcp.pop %v349
  %v352 = vmul.f32 1.0, %v351
  %v353 = vrcp.pop %v350
  %v354 = vmul.f32 1.0, %v353
  %v355 = vpack.c.bf16 %v354, %v352
  %v356 = vld [vmem:[%s3] sm:$0xf]
  %v357 = vld [vmem:[%s3 + $0x4] sm:$0xf]
  %v358 = vld [vmem:[%s3 + $0x8] sm:$0xf]
  %v359 = vld [vmem:[%s3 + $0xc] sm:$0xf]
  %v360 = vld [vmem:[%s3 + $0x10] sm:$0xf]
  %v361 = vld [vmem:[%s3 + $0x14] sm:$0xf]
  %v362 = vld [vmem:[%s3 + $0x18] sm:$0xf]
  %v363 = vld [vmem:[%s3 + $0x1c] sm:$0xf]
  %v364 = vld [vmem:[%s3 + $0x20] sm:$0xf]
  %v365 = vld [vmem:[%s3 + $0x24] sm:$0xf]
  %v366 = vld [vmem:[%s3 + $0x28] sm:$0xf]
  %v367 = vld [vmem:[%s3 + $0x2c] sm:$0xf]
  %v368 = vld [vmem:[%s3 + $0x30] sm:$0xf]
  %v369 = vld [vmem:[%s3 + $0x34] sm:$0xf]
  %v370 = vld [vmem:[%s3 + $0x38] sm:$0xf]
  %v371 = vld [vmem:[%s3 + $0x3c] sm:$0xf]
  %v372 = vld [vmem:[%s4] sm:$0x1]
  %v374 = vlaneseq
  %v375 = vshrl.u32 %v374, 7
  %v376 = vsub.s32 0, %v375
  %v377 = vrot.slane %v372, %v376
  %v395 = vunpack.c.l.b16 %v356
  %v396 = vunpack.c.l.b16 %v357
  %v397 = vunpack.c.l.b16 %v358
  %v398 = vunpack.c.l.b16 %v359
  %v399 = vunpack.c.l.b16 %v360
  %v400 = vunpack.c.l.b16 %v361
  %v401 = vunpack.c.l.b16 %v362
  %v402 = vunpack.c.l.b16 %v363
  %v403 = vunpack.c.l.b16 %v364
  %v404 = vunpack.c.l.b16 %v365
  %v405 = vunpack.c.l.b16 %v366
  %v406 = vunpack.c.l.b16 %v367
  %v407 = vunpack.c.l.b16 %v368
  %v408 = vunpack.c.l.b16 %v369
  %v409 = vunpack.c.l.b16 %v370
  %v410 = vunpack.c.l.b16 %v371
  %v411 = vpack.c.b16 %v396, %v395
  %v412 = vpack.c.b16 %v398, %v397
  %v413 = vpack.c.b16 %v400, %v399
  %v414 = vpack.c.b16 %v402, %v401
  %v415 = vpack.c.b16 %v404, %v403
  %v416 = vpack.c.b16 %v406, %v405
  %v417 = vpack.c.b16 %v408, %v407
  %v418 = vpack.c.b16 %v410, %v409
  %427 = vmatprep.subr.bf16.mxu0 0
  %428 = vmatpush1.bf16.msra.mxu0 %v418
  %429 = vmatprep.subr.bf16.mxu0 0
  %430 = vmatpush1.bf16.msra.mxu0 %v417
  %431 = vmatprep.subr.bf16.mxu0 0
  %432 = vmatpush1.bf16.msra.mxu0 %v416
  %433 = vmatprep.subr.bf16.mxu0 0
  %434 = vmatpush1.bf16.msra.mxu0 %v415
  %435 = vmatprep.subr.bf16.mxu0 0
  %436 = vmatpush1.bf16.msra.mxu0 %v414
  %437 = vmatprep.subr.bf16.mxu0 0
  %438 = vmatpush1.bf16.msra.mxu0 %v413
  %439 = vmatprep.subr.bf16.mxu0 0
  %440 = vmatpush1.bf16.msra.mxu0 %v412
  %441 = vmatprep.subr.bf16.mxu0 0
  %442 = vmatpush1.bf16.msra.mxu0 %v411
  %443 = vmatprep.subr.bf16.mxu0 0
  %444 = vmatpush2.bf16.msra.mxu0 0
  %445 = vmatprep.subr.bf16.mxu0 0
  %446 = vmatpush2.bf16.msra.mxu0 0
  %447 = vmatprep.subr.bf16.mxu0 0
  %448 = vmatpush2.bf16.msra.mxu0 0
  %449 = vmatprep.subr.bf16.mxu0 0
  %450 = vmatpush2.bf16.msra.mxu0 0
  %451 = vmatprep.subr.bf16.mxu0 0
  %452 = vmatpush2.bf16.msra.mxu0 0
  %453 = vmatprep.subr.bf16.mxu0 0
  %454 = vmatpush2.bf16.msra.mxu0 0
  %455 = vmatprep.subr.bf16.mxu0 0
  %456 = vmatpush2.bf16.msra.mxu0 0
  %457 = vmatprep.subr.bf16.mxu0 0
  %458 = vmatpush2.bf16.msra.mxu0 0
  %459 = vmatprep.mubr.bf16.mxu0 0
  %460 = vmatmul.mubr.bf16.gmra.mxu0 %v355
  %v461 = vpop.f32.mrf.mxu0
  %v462 = vadd.f32 %v377, %v461
  %v463 = vpop.f32.mrf.mxu0
  %v464 = vpop.f32.mrf.mxu0
  %v465 = vadd.f32 %v377, %v464
  %v466 = vpop.f32.mrf.mxu0
  %467 = vdwg.mxu0
  %v468 = vxor.u32 %v462, 2147483648
  %v469 = vxor.u32 %v465, 2147483648
  %v470 = vmul.f32 %v468, 1.442695
  %v471 = vpow.pop %v470
  %v472 = vmul.f32 %v469, 1.442695
  %v473 = vpow.pop %v472
  %v474 = vadd.f32 %v471, 1.0
  %v475 = vadd.f32 %v473, 1.0
  %v476 = vrcp.pop %v474
  %v477 = vmul.f32 1.0, %v476
  %v478 = vrcp.pop %v475
  %v479 = vmul.f32 1.0, %v478
  %v480 = vpack.c.bf16 %v479, %v477
  %v481 = vld [vmem:[%s5] sm:$0xf]
  %v482 = vld [vmem:[%s5 + $0x4] sm:$0xf]
  %v483 = vld [vmem:[%s5 + $0x8] sm:$0xf]
  %v484 = vld [vmem:[%s5 + $0xc] sm:$0xf]
  %v485 = vld [vmem:[%s5 + $0x10] sm:$0xf]
  %v486 = vld [vmem:[%s5 + $0x14] sm:$0xf]
  %v487 = vld [vmem:[%s5 + $0x18] sm:$0xf]
  %v488 = vld [vmem:[%s5 + $0x1c] sm:$0xf]
  %v489 = vld [vmem:[%s5 + $0x20] sm:$0xf]
  %v490 = vld [vmem:[%s5 + $0x24] sm:$0xf]
  %v491 = vld [vmem:[%s5 + $0x28] sm:$0xf]
  %v492 = vld [vmem:[%s5 + $0x2c] sm:$0xf]
  %v493 = vld [vmem:[%s5 + $0x30] sm:$0xf]
  %v494 = vld [vmem:[%s5 + $0x34] sm:$0xf]
  %v495 = vld [vmem:[%s5 + $0x38] sm:$0xf]
  %v496 = vld [vmem:[%s5 + $0x3c] sm:$0xf]
  %v497 = vld [vmem:[%s6] sm:$0x1]
  %v499 = vlaneseq
  %v500 = vshrl.u32 %v499, 7
  %v501 = vsub.s32 0, %v500
  %v502 = vrot.slane %v497, %v501
  %v520 = vunpack.c.l.b16 %v481
  %v521 = vunpack.c.l.b16 %v482
  %v522 = vunpack.c.l.b16 %v483
  %v523 = vunpack.c.l.b16 %v484
  %v524 = vunpack.c.l.b16 %v485
  %v525 = vunpack.c.l.b16 %v486
  %v526 = vunpack.c.l.b16 %v487
  %v527 = vunpack.c.l.b16 %v488
  %v528 = vunpack.c.l.b16 %v489
  %v529 = vunpack.c.l.b16 %v490
  %v530 = vunpack.c.l.b16 %v491
  %v531 = vunpack.c.l.b16 %v492
  %v532 = vunpack.c.l.b16 %v493
  %v533 = vunpack.c.l.b16 %v494
  %v534 = vunpack.c.l.b16 %v495
  %v535 = vunpack.c.l.b16 %v496
  %v536 = vpack.c.b16 %v521, %v520
  %v537 = vpack.c.b16 %v523, %v522
  %v538 = vpack.c.b16 %v525, %v524
  %v539 = vpack.c.b16 %v527, %v526
  %v540 = vpack.c.b16 %v529, %v528
  %v541 = vpack.c.b16 %v531, %v530
  %v542 = vpack.c.b16 %v533, %v532
  %v543 = vpack.c.b16 %v535, %v534
  %552 = vmatprep.subr.bf16.mxu0 0
  %553 = vmatpush1.bf16.msra.mxu0 %v543
  %554 = vmatprep.subr.bf16.mxu0 0
  %555 = vmatpush1.bf16.msra.mxu0 %v542
  %556 = vmatprep.subr.bf16.mxu0 0
  %557 = vmatpush1.bf16.msra.mxu0 %v541
  %558 = vmatprep.subr.bf16.mxu0 0
  %559 = vmatpush1.bf16.msra.mxu0 %v540
  %560 = vmatprep.subr.bf16.mxu0 0
  %561 = vmatpush1.bf16.msra.mxu0 %v539
  %562 = vmatprep.subr.bf16.mxu0 0
  %563 = vmatpush1.bf16.msra.mxu0 %v538
  %564 = vmatprep.subr.bf16.mxu0 0
  %565 = vmatpush1.bf16.msra.mxu0 %v537
  %566 = vmatprep.subr.bf16.mxu0 0
  %567 = vmatpush1.bf16.msra.mxu0 %v536
  %568 = vmatprep.subr.bf16.mxu0 0
  %569 = vmatpush2.bf16.msra.mxu0 0
  %570 = vmatprep.subr.bf16.mxu0 0
  %571 = vmatpush2.bf16.msra.mxu0 0
  %572 = vmatprep.subr.bf16.mxu0 0
  %573 = vmatpush2.bf16.msra.mxu0 0
  %574 = vmatprep.subr.bf16.mxu0 0
  %575 = vmatpush2.bf16.msra.mxu0 0
  %576 = vmatprep.subr.bf16.mxu0 0
  %577 = vmatpush2.bf16.msra.mxu0 0
  %578 = vmatprep.subr.bf16.mxu0 0
  %579 = vmatpush2.bf16.msra.mxu0 0
  %580 = vmatprep.subr.bf16.mxu0 0
  %581 = vmatpush2.bf16.msra.mxu0 0
  %582 = vmatprep.subr.bf16.mxu0 0
  %583 = vmatpush2.bf16.msra.mxu0 0
  %584 = vmatprep.mubr.bf16.mxu0 0
  %585 = vmatmul.mubr.bf16.gmra.mxu0 %v480
  %v586 = vpop.f32.mrf.mxu0
  %v587 = vadd.f32 %v502, %v586
  %v588 = vpop.f32.mrf.mxu0
  %v589 = vpop.f32.mrf.mxu0
  %v590 = vadd.f32 %v502, %v589
  %v591 = vpop.f32.mrf.mxu0
  %592 = vdwg.mxu0
  %593 = vst [vmem:[%s7] sm:$0xff] %v587
  %594 = vst [vmem:[%s7 + $0x8] sm:$0xff] %v590
  // Predicated region
  $region30: #{lenet_forward.5} parent=0 // pred_check
    _
  $region31: #{lenet_forward.5} parent=0 // pred_check_branch
    %596 = sbr.rel (0) target = $region33
  $region32: #{lenet_forward.5} parent=0 // pred_region
    _
  $region33: #{lenet_forward.5} parent=0 // pred_fallthru
    _
  // Predicated region
  $region34: #{lenet_forward.5} parent=0 // pred_check
    _
  $region35: #{lenet_forward.5} parent=0 // pred_check_branch
    %598 = sbr.rel (0) target = $region37
  $region36: #{lenet_forward.5} parent=0 // pred_region
    _
  $region37: #{lenet_forward.5} parent=0 // pred_fallthru
    _

</llo_original>
